<compile_context>
chip_gen: v7x
topology: tpu7x:2x2x1
jax: 0.10.0
libtpu: 0.0.40
codegen_flags: <defaults>
</compile_context>

<pallas_src>
import jax
import jax.numpy as jnp
from jax.experimental import pallas as pl
from jax.experimental.pallas import tpu as pltpu


# --------------------------------------------------------------------------- #
# Fully fused kernel: input GEMM -> GRU time loop -> BN(eval) + MLP head      #
# --------------------------------------------------------------------------- #
def _fused_gru_kernel(x_ref, wih_ref, bih_ref, whh_ref, bhh_ref,
                      gamma_ref, beta_ref, mean_ref, var_ref,
                      w1_ref, b1_ref, w2_ref, b2_ref, w3_ref, b3_ref,
                      o_ref, xp_ref):
    B = o_ref.shape[0]
    H = whh_ref.shape[0]
    T = x_ref.shape[0] // B

    # --- 1) Input projection for ALL timesteps in one lane-dense MXU GEMM ---
    #        (T*B, C) @ (C, 3H) + b_ih  -> VMEM scratch (T*B, 3H)
    xp_ref[...] = (jnp.dot(x_ref[...], wih_ref[...],
                           preferred_element_type=jnp.float32)
                   + bih_ref[...])

    whh = whh_ref[...]                      # (H, 3H) bf16, VMEM-resident
    bhh = bhh_ref[...]                      # (1, 3H) f32

    # --- 2) Sequential GRU recurrence (T is compile-time static -> unrolled) -
    h = jnp.zeros((B, H), jnp.float32)      # h0 = zeros (as in the module)
    for t in range(T):
        xp = xp_ref[pl.ds(t * B, B), :]     # (B, 3H) for this timestep
        # Recurrent projection of all three gates in one MXU pass (bf16 ops,
        # f32 accumulate).
        hp = jnp.dot(h.astype(jnp.bfloat16), whh,
                     preferred_element_type=jnp.float32) + bhh
        # PyTorch gate ordering [r | z | n]; b_hn sits inside the r * (.) term.
        g_rz = xp[:, :2 * H] + hp[:, :2 * H]
        r = jax.nn.sigmoid(g_rz[:, :H])
        z = jax.nn.sigmoid(g_rz[:, H:])
        n = jnp.tanh(xp[:, 2 * H:] + r * hp[:, 2 * H:])
        h = n + z * (h - n)                 # == (1 - z) * n + z * h

    # --- 3) BatchNorm1d (inference) -> Dropout(p=0)=id -> MLP head ----------
    inv = jax.lax.rsqrt(var_ref[...] + 1e-5)
    x = (h - mean_ref[...]) * inv * gamma_ref[...] + beta_ref[...]
    x = jnp.maximum(
        jnp.dot(x, w1_ref[...], preferred_element_type=jnp.float32) + b1_ref[...],
        0.0)                                # ReLU
    x = jnp.maximum(
        jnp.dot(x, w2_ref[...], preferred_element_type=jnp.float32) + b2_ref[...],
        0.0)                                # ReLU
    x = jnp.dot(x, w3_ref[...], preferred_element_type=jnp.float32) + b3_ref[...]
    # task_type='regression' -> Identity output activation.
    o_ref[...] = x.astype(o_ref.dtype)


# --------------------------------------------------------------------------- #
# Full forward                                                                #
# --------------------------------------------------------------------------- #
def gru_forward(X, params):
    """X: (batch, in_channels, seq_len) — same layout as the PyTorch module."""
    B, C, T = X.shape
    H = params["w_hh_t"].shape[0]
    Hid = params["w1_t"].shape[1]
    E = params["w2_t"].shape[1]
    O = params["w3_t"].shape[1]

    # X.permute(0,2,1) -> (B,T,C); flatten time-major so one in-kernel GEMM
    # covers all timesteps.  (Tiny copy at these shapes; for large B/C/T this
    # layout change could be folded into the kernel via dot_general over C.)
    x_flat = jnp.transpose(X, (2, 0, 1)).reshape(T * B, C)

    # bf16 recurrent weights: fewer MXU passes on the serial per-step path.
    whh_bf16 = params["w_hh_t"].astype(jnp.bfloat16)

    def full(shape):
        return pl.BlockSpec(shape, lambda i: (0,) * len(shape))

    return pl.pallas_call(
        _fused_gru_kernel,
        out_shape=jax.ShapeDtypeStruct((B, O), jnp.float32),
        grid_spec=pltpu.PrefetchScalarGridSpec(
            num_scalar_prefetch=0,
            grid=(1,),
            in_specs=[
                full((T * B, C)),                     # streamed activations
                full((C, 3 * H)), full((1, 3 * H)),   # W_ih^T, b_ih
                full((H, 3 * H)), full((1, 3 * H)),   # W_hh^T (bf16), b_hh
                full((1, H)), full((1, H)),           # BN gamma, beta
                full((1, H)), full((1, H)),           # BN mean, var
                full((H, Hid)), full((1, Hid)),       # Linear1
                full((Hid, E)), full((1, E)),         # Linear2
                full((E, O)), full((1, O)),           # output Linear
            ],
            out_specs=full((B, O)),
            scratch_shapes=[pltpu.VMEM((T * B, 3 * H), jnp.float32)],
        ),
        compiler_params=pltpu.CompilerParams(
            dimension_semantics=("arbitrary",)),
    )(x_flat,
      params["w_ih_t"], params["b_ih"],
      whh_bf16, params["b_hh"],
      params["bn_gamma"], params["bn_beta"], params["bn_mean"], params["bn_var"],
      params["w1_t"], params["b1"],
      params["w2_t"], params["b2"],
      params["w3_t"], params["b3"])


if __name__ == "__main__":
    # Small shapes consistent with the module; gru_size=128 keeps 3H lane-dense.
    batch, in_channels, n_sequences = 8, 32, 8
    gru_size, hidden_channels, end_channels, out_channels = 128, 128, 128, 8

    key = jax.random.PRNGKey(0)
    keys = jax.random.split(key, 8)

    def uni(k, shape, scale):
        return jax.random.uniform(k, shape, jnp.float32, -scale, scale)

    # PyTorch GRU parameter layout: weight_ih_l0 (3H, K), weight_hh_l0 (3H, H).
    s = 1.0 / float(gru_size) ** 0.5
    w_ih = uni(keys[0], (3 * gru_size, in_channels), s)
    w_hh = uni(keys[1], (3 * gru_size, gru_size), s)
    b_ih = uni(keys[2], (3 * gru_size,), s)
    b_hh = uni(keys[3], (3 * gru_size,), s)

    # Linear layers (PyTorch layout: weight (out, in)).
    def lin_init(k, out_f, in_f):
        kw, kb = jax.random.split(k)
        lim = 1.0 / float(in_f) ** 0.5
        return (jax.random.uniform(kw, (out_f, in_f), jnp.float32, -lim, lim),
                jax.random.uniform(kb, (out_f,), jnp.float32, -lim, lim))

    w1, b1 = lin_init(keys[4], hidden_channels, gru_size)
    w2, b2 = lin_init(keys[5], end_channels, hidden_channels)
    w3, b3 = lin_init(keys[6], out_channels, end_channels)

    # BatchNorm1d(gru_size) inference-mode parameters / running stats.
    bn_gamma = jnp.ones((gru_size,), jnp.float32)
    bn_beta = jnp.zeros((gru_size,), jnp.float32)
    bn_mean = jnp.zeros((gru_size,), jnp.float32)
    bn_var = jnp.ones((gru_size,), jnp.float32)

    X = jax.random.normal(keys[7], (batch, in_channels, n_sequences), jnp.float32)

    params = dict(
        w_ih_t=w_ih.T, b_ih=b_ih.reshape(1, -1),
        w_hh_t=w_hh.T, b_hh=b_hh.reshape(1, -1),
        bn_gamma=bn_gamma.reshape(1, -1), bn_beta=bn_beta.reshape(1, -1),
        bn_mean=bn_mean.reshape(1, -1), bn_var=bn_var.reshape(1, -1),
        w1_t=w1.T, b1=b1.reshape(1, -1),
        w2_t=w2.T, b2=b2.reshape(1, -1),
        w3_t=w3.T, b3=b3.reshape(1, -1),
    )

    out = jax.jit(gru_forward)(X, params)
    jax.block_until_ready(out)

    # ---------------- Pure-JAX reference (matches PyTorch GRU math) ----------
    H = gru_size
    x_seq = jnp.transpose(X, (0, 2, 1))               # (B, T, C)
    h = jnp.zeros((batch, H), jnp.float32)
    for t in range(n_sequences):
        xt = x_seq[:, t, :]
        gi = xt @ w_ih.T + b_ih
        gh = h @ w_hh.T + b_hh
        r = jax.nn.sigmoid(gi[:, :H] + gh[:, :H])
        z = jax.nn.sigmoid(gi[:, H:2 * H] + gh[:, H:2 * H])
        n = jnp.tanh(gi[:, 2 * H:] + r * gh[:, 2 * H:])
        h = (1.0 - z) * n + z * h
    xr = (h - bn_mean) / jnp.sqrt(bn_var + 1e-5) * bn_gamma + bn_beta
    xr = jnp.maximum(xr @ w1.T + b1, 0.0)
    xr = jnp.maximum(xr @ w2.T + b2, 0.0)
    ref = xr @ w3.T + b3

    assert out.shape == (batch, out_channels)
    max_err = float(jnp.max(jnp.abs(out - ref)))
    # Tolerance absorbs bf16 recurrent-weight MXU passes and TPU default
    # matmul precision differences vs. the f32 reference.
    assert jnp.allclose(out, ref, atol=2e-2, rtol=2e-2), max_err

    print("KERNEL_OK")
</pallas_src>

<mosaic_0001>
module attributes {stable_mosaic.version = 11 : i64} {
  func.func @_fused_gru_kernel(%arg0: i32, %arg1: memref<64x32xf32, #tpu.memory_space<vmem>>, %arg2: memref<32x384xf32, #tpu.memory_space<vmem>>, %arg3: memref<1x384xf32, #tpu.memory_space<vmem>>, %arg4: memref<128x384xbf16, #tpu.memory_space<vmem>>, %arg5: memref<1x384xf32, #tpu.memory_space<vmem>>, %arg6: memref<1x128xf32, #tpu.memory_space<vmem>>, %arg7: memref<1x128xf32, #tpu.memory_space<vmem>>, %arg8: memref<1x128xf32, #tpu.memory_space<vmem>>, %arg9: memref<1x128xf32, #tpu.memory_space<vmem>>, %arg10: memref<128x128xf32, #tpu.memory_space<vmem>>, %arg11: memref<1x128xf32, #tpu.memory_space<vmem>>, %arg12: memref<128x128xf32, #tpu.memory_space<vmem>>, %arg13: memref<1x128xf32, #tpu.memory_space<vmem>>, %arg14: memref<128x8xf32, #tpu.memory_space<vmem>>, %arg15: memref<1x8xf32, #tpu.memory_space<vmem>>, %arg16: memref<8x8xf32, #tpu.memory_space<vmem>>, %arg17: memref<64x384xf32, #tpu.memory_space<vmem>>) attributes {dimension_semantics = [#tpu.dimension_semantics<arbitrary>], iteration_bounds = array<i64: 1>, scalar_prefetch = 0 : i64, scratch_operands = 1 : i64, tpu.core_type = #tpu.core_type<tc>, window_params = [{pipeline_mode = #tpu.pipeline_mode<synchronous>, transform_indices = @transform_0, window_bounds = array<i64: 64, 32>}, {pipeline_mode = #tpu.pipeline_mode<synchronous>, transform_indices = @transform_1, window_bounds = array<i64: 32, 384>}, {pipeline_mode = #tpu.pipeline_mode<synchronous>, transform_indices = @transform_2, window_bounds = array<i64: 1, 384>}, {pipeline_mode = #tpu.pipeline_mode<synchronous>, transform_indices = @transform_3, window_bounds = array<i64: 128, 384>}, {pipeline_mode = #tpu.pipeline_mode<synchronous>, transform_indices = @transform_4, window_bounds = array<i64: 1, 384>}, {pipeline_mode = #tpu.pipeline_mode<synchronous>, transform_indices = @transform_5, window_bounds = array<i64: 1, 128>}, {pipeline_mode = #tpu.pipeline_mode<synchronous>, transform_indices = @transform_6, window_bounds = array<i64: 1, 128>}, {pipeline_mode = #tpu.pipeline_mode<synchronous>, transform_indices = @transform_7, window_bounds = array<i64: 1, 128>}, {pipeline_mode = #tpu.pipeline_mode<synchronous>, transform_indices = @transform_8, window_bounds = array<i64: 1, 128>}, {pipeline_mode = #tpu.pipeline_mode<synchronous>, transform_indices = @transform_9, window_bounds = array<i64: 128, 128>}, {pipeline_mode = #tpu.pipeline_mode<synchronous>, transform_indices = @transform_10, window_bounds = array<i64: 1, 128>}, {pipeline_mode = #tpu.pipeline_mode<synchronous>, transform_indices = @transform_11, window_bounds = array<i64: 128, 128>}, {pipeline_mode = #tpu.pipeline_mode<synchronous>, transform_indices = @transform_12, window_bounds = array<i64: 1, 128>}, {pipeline_mode = #tpu.pipeline_mode<synchronous>, transform_indices = @transform_13, window_bounds = array<i64: 128, 8>}, {pipeline_mode = #tpu.pipeline_mode<synchronous>, transform_indices = @transform_14, window_bounds = array<i64: 1, 8>}, {pipeline_mode = #tpu.pipeline_mode<synchronous>, transform_indices = @transform_15, window_bounds = array<i64: 8, 8>}]} {
    %c0 = arith.constant 0 : index
    %c0_0 = arith.constant 0 : index
    %0 = vector.load %arg1[%c0, %c0_0] : memref<64x32xf32, #tpu.memory_space<vmem>>, vector<64x32xf32>
    %c0_1 = arith.constant 0 : index
    %c0_2 = arith.constant 0 : index
    %1 = vector.load %arg2[%c0_1, %c0_2] : memref<32x384xf32, #tpu.memory_space<vmem>>, vector<32x384xf32>
    %cst = arith.constant dense<0.000000e+00> : vector<64x384xf32>
    %2 = tpu.matmul %0, %1, %cst {dimension_numbers = #tpu.dot_dimension_numbers<[1], [0], [0], [1], [0, 0, 1, 1], [], []>} : vector<64x32xf32>, vector<32x384xf32>, vector<64x384xf32> -> vector<64x384xf32>
    %c0_3 = arith.constant 0 : index
    %c0_4 = arith.constant 0 : index
    %3 = vector.load %arg3[%c0_3, %c0_4] : memref<1x384xf32, #tpu.memory_space<vmem>>, vector<1x384xf32>
    %4 = vector.broadcast %3 : vector<1x384xf32> to vector<64x384xf32>
    %5 = arith.addf %2, %4 : vector<64x384xf32>
    %c0_5 = arith.constant 0 : index
    %c0_6 = arith.constant 0 : index
    %6 = vector.load %arg17[%c0_5, %c0_6] : memref<64x384xf32, #tpu.memory_space<vmem>>, vector<64x384xf32>
    tpu.vector_store %arg17[%c0_5, %c0_6], %5 {strides = array<i32>} : memref<64x384xf32, #tpu.memory_space<vmem>>, vector<64x384xf32>,
    %c0_7 = arith.constant 0 : index
    %c0_8 = arith.constant 0 : index
    %7 = vector.load %arg4[%c0_7, %c0_8] : memref<128x384xbf16, #tpu.memory_space<vmem>>, vector<128x384xbf16>
    %c0_9 = arith.constant 0 : index
    %c0_10 = arith.constant 0 : index
    %8 = vector.load %arg5[%c0_9, %c0_10] : memref<1x384xf32, #tpu.memory_space<vmem>>, vector<1x384xf32>
    %cst_11 = arith.constant 0.000000e+00 : f32
    %9 = vector.broadcast %cst_11 : f32 to vector<8x128xf32>
    %c0_12 = arith.constant 0 : index
    %c0_13 = arith.constant 0 : index
    %10 = vector.load %arg17[%c0_12, %c0_13] : memref<64x384xf32, #tpu.memory_space<vmem>>, vector<8x384xf32>
    %11 = arith.truncf %9 : vector<8x128xf32> to vector<8x128xbf16>
    %cst_14 = arith.constant dense<0.000000e+00> : vector<8x384xf32>
    %12 = tpu.matmul %11, %7, %cst_14 {dimension_numbers = #tpu.dot_dimension_numbers<[1], [0], [0], [1], [0, 0, 1, 1], [], []>} : vector<8x128xbf16>, vector<128x384xbf16>, vector<8x384xf32> -> vector<8x384xf32>
    %13 = vector.broadcast %8 : vector<1x384xf32> to vector<8x384xf32>
    %14 = arith.addf %12, %13 : vector<8x384xf32>
    %15 = vector.extract_strided_slice %10 {offsets = [0, 0], sizes = [8, 256], strides = [1, 1]} : vector<8x384xf32> to vector<8x256xf32>
    %16 = vector.extract_strided_slice %14 {offsets = [0, 0], sizes = [8, 256], strides = [1, 1]} : vector<8x384xf32> to vector<8x256xf32>
    %17 = arith.addf %15, %16 : vector<8x256xf32>
    %18 = vector.extract_strided_slice %17 {offsets = [0, 0], sizes = [8, 128], strides = [1, 1]} : vector<8x256xf32> to vector<8x128xf32>
    %19 = arith.negf %18 : vector<8x128xf32>
    %20 = math.exp %19 : vector<8x128xf32>
    %cst_15 = arith.constant 1.000000e+00 : f32
    %21 = vector.broadcast %cst_15 : f32 to vector<8x128xf32>
    %22 = arith.addf %21, %20 : vector<8x128xf32>
    %23 = arith.divf %21, %22 : vector<8x128xf32>
    %24 = vector.extract_strided_slice %17 {offsets = [0, 128], sizes = [8, 128], strides = [1, 1]} : vector<8x256xf32> to vector<8x128xf32>
    %25 = arith.negf %24 : vector<8x128xf32>
    %26 = math.exp %25 : vector<8x128xf32>
    %cst_16 = arith.constant 1.000000e+00 : f32
    %27 = vector.broadcast %cst_16 : f32 to vector<8x128xf32>
    %28 = arith.addf %27, %26 : vector<8x128xf32>
    %29 = arith.divf %27, %28 : vector<8x128xf32>
    %30 = vector.extract_strided_slice %10 {offsets = [0, 256], sizes = [8, 128], strides = [1, 1]} : vector<8x384xf32> to vector<8x128xf32>
    %31 = vector.extract_strided_slice %14 {offsets = [0, 256], sizes = [8, 128], strides = [1, 1]} : vector<8x384xf32> to vector<8x128xf32>
    %32 = arith.mulf %23, %31 : vector<8x128xf32>
    %33 = arith.addf %30, %32 : vector<8x128xf32>
    %34 = math.tanh %33 : vector<8x128xf32>
    %35 = arith.subf %9, %34 : vector<8x128xf32>
    %36 = arith.mulf %29, %35 : vector<8x128xf32>
    %37 = arith.addf %34, %36 : vector<8x128xf32>
    %c8 = arith.constant 8 : index
    %c0_17 = arith.constant 0 : index
    %38 = vector.load %arg17[%c8, %c0_17] : memref<64x384xf32, #tpu.memory_space<vmem>>, vector<8x384xf32>
    %39 = arith.truncf %37 : vector<8x128xf32> to vector<8x128xbf16>
    %cst_18 = arith.constant dense<0.000000e+00> : vector<8x384xf32>
    %40 = tpu.matmul %39, %7, %cst_18 {dimension_numbers = #tpu.dot_dimension_numbers<[1], [0], [0], [1], [0, 0, 1, 1], [], []>} : vector<8x128xbf16>, vector<128x384xbf16>, vector<8x384xf32> -> vector<8x384xf32>
    %41 = vector.broadcast %8 : vector<1x384xf32> to vector<8x384xf32>
    %42 = arith.addf %40, %41 : vector<8x384xf32>
    %43 = vector.extract_strided_slice %38 {offsets = [0, 0], sizes = [8, 256], strides = [1, 1]} : vector<8x384xf32> to vector<8x256xf32>
    %44 = vector.extract_strided_slice %42 {offsets = [0, 0], sizes = [8, 256], strides = [1, 1]} : vector<8x384xf32> to vector<8x256xf32>
    %45 = arith.addf %43, %44 : vector<8x256xf32>
    %46 = vector.extract_strided_slice %45 {offsets = [0, 0], sizes = [8, 128], strides = [1, 1]} : vector<8x256xf32> to vector<8x128xf32>
    %47 = arith.negf %46 : vector<8x128xf32>
    %48 = math.exp %47 : vector<8x128xf32>
    %cst_19 = arith.constant 1.000000e+00 : f32
    %49 = vector.broadcast %cst_19 : f32 to vector<8x128xf32>
    %50 = arith.addf %49, %48 : vector<8x128xf32>
    %51 = arith.divf %49, %50 : vector<8x128xf32>
    %52 = vector.extract_strided_slice %45 {offsets = [0, 128], sizes = [8, 128], strides = [1, 1]} : vector<8x256xf32> to vector<8x128xf32>
    %53 = arith.negf %52 : vector<8x128xf32>
    %54 = math.exp %53 : vector<8x128xf32>
    %cst_20 = arith.constant 1.000000e+00 : f32
    %55 = vector.broadcast %cst_20 : f32 to vector<8x128xf32>
    %56 = arith.addf %55, %54 : vector<8x128xf32>
    %57 = arith.divf %55, %56 : vector<8x128xf32>
    %58 = vector.extract_strided_slice %38 {offsets = [0, 256], sizes = [8, 128], strides = [1, 1]} : vector<8x384xf32> to vector<8x128xf32>
    %59 = vector.extract_strided_slice %42 {offsets = [0, 256], sizes = [8, 128], strides = [1, 1]} : vector<8x384xf32> to vector<8x128xf32>
    %60 = arith.mulf %51, %59 : vector<8x128xf32>
    %61 = arith.addf %58, %60 : vector<8x128xf32>
    %62 = math.tanh %61 : vector<8x128xf32>
    %63 = arith.subf %37, %62 : vector<8x128xf32>
    %64 = arith.mulf %57, %63 : vector<8x128xf32>
    %65 = arith.addf %62, %64 : vector<8x128xf32>
    %c16 = arith.constant 16 : index
    %c0_21 = arith.constant 0 : index
    %66 = vector.load %arg17[%c16, %c0_21] : memref<64x384xf32, #tpu.memory_space<vmem>>, vector<8x384xf32>
    %67 = arith.truncf %65 : vector<8x128xf32> to vector<8x128xbf16>
    %cst_22 = arith.constant dense<0.000000e+00> : vector<8x384xf32>
    %68 = tpu.matmul %67, %7, %cst_22 {dimension_numbers = #tpu.dot_dimension_numbers<[1], [0], [0], [1], [0, 0, 1, 1], [], []>} : vector<8x128xbf16>, vector<128x384xbf16>, vector<8x384xf32> -> vector<8x384xf32>
    %69 = vector.broadcast %8 : vector<1x384xf32> to vector<8x384xf32>
    %70 = arith.addf %68, %69 : vector<8x384xf32>
    %71 = vector.extract_strided_slice %66 {offsets = [0, 0], sizes = [8, 256], strides = [1, 1]} : vector<8x384xf32> to vector<8x256xf32>
    %72 = vector.extract_strided_slice %70 {offsets = [0, 0], sizes = [8, 256], strides = [1, 1]} : vector<8x384xf32> to vector<8x256xf32>
    %73 = arith.addf %71, %72 : vector<8x256xf32>
    %74 = vector.extract_strided_slice %73 {offsets = [0, 0], sizes = [8, 128], strides = [1, 1]} : vector<8x256xf32> to vector<8x128xf32>
    %75 = arith.negf %74 : vector<8x128xf32>
    %76 = math.exp %75 : vector<8x128xf32>
    %cst_23 = arith.constant 1.000000e+00 : f32
    %77 = vector.broadcast %cst_23 : f32 to vector<8x128xf32>
    %78 = arith.addf %77, %76 : vector<8x128xf32>
    %79 = arith.divf %77, %78 : vector<8x128xf32>
    %80 = vector.extract_strided_slice %73 {offsets = [0, 128], sizes = [8, 128], strides = [1, 1]} : vector<8x256xf32> to vector<8x128xf32>
    %81 = arith.negf %80 : vector<8x128xf32>
    %82 = math.exp %81 : vector<8x128xf32>
    %cst_24 = arith.constant 1.000000e+00 : f32
    %83 = vector.broadcast %cst_24 : f32 to vector<8x128xf32>
    %84 = arith.addf %83, %82 : vector<8x128xf32>
    %85 = arith.divf %83, %84 : vector<8x128xf32>
    %86 = vector.extract_strided_slice %66 {offsets = [0, 256], sizes = [8, 128], strides = [1, 1]} : vector<8x384xf32> to vector<8x128xf32>
    %87 = vector.extract_strided_slice %70 {offsets = [0, 256], sizes = [8, 128], strides = [1, 1]} : vector<8x384xf32> to vector<8x128xf32>
    %88 = arith.mulf %79, %87 : vector<8x128xf32>
    %89 = arith.addf %86, %88 : vector<8x128xf32>
    %90 = math.tanh %89 : vector<8x128xf32>
    %91 = arith.subf %65, %90 : vector<8x128xf32>
    %92 = arith.mulf %85, %91 : vector<8x128xf32>
    %93 = arith.addf %90, %92 : vector<8x128xf32>
    %c24 = arith.constant 24 : index
    %c0_25 = arith.constant 0 : index
    %94 = vector.load %arg17[%c24, %c0_25] : memref<64x384xf32, #tpu.memory_space<vmem>>, vector<8x384xf32>
    %95 = arith.truncf %93 : vector<8x128xf32> to vector<8x128xbf16>
    %cst_26 = arith.constant dense<0.000000e+00> : vector<8x384xf32>
    %96 = tpu.matmul %95, %7, %cst_26 {dimension_numbers = #tpu.dot_dimension_numbers<[1], [0], [0], [1], [0, 0, 1, 1], [], []>} : vector<8x128xbf16>, vector<128x384xbf16>, vector<8x384xf32> -> vector<8x384xf32>
    %97 = vector.broadcast %8 : vector<1x384xf32> to vector<8x384xf32>
    %98 = arith.addf %96, %97 : vector<8x384xf32>
    %99 = vector.extract_strided_slice %94 {offsets = [0, 0], sizes = [8, 256], strides = [1, 1]} : vector<8x384xf32> to vector<8x256xf32>
    %100 = vector.extract_strided_slice %98 {offsets = [0, 0], sizes = [8, 256], strides = [1, 1]} : vector<8x384xf32> to vector<8x256xf32>
    %101 = arith.addf %99, %100 : vector<8x256xf32>
    %102 = vector.extract_strided_slice %101 {offsets = [0, 0], sizes = [8, 128], strides = [1, 1]} : vector<8x256xf32> to vector<8x128xf32>
    %103 = arith.negf %102 : vector<8x128xf32>
    %104 = math.exp %103 : vector<8x128xf32>
    %cst_27 = arith.constant 1.000000e+00 : f32
    %105 = vector.broadcast %cst_27 : f32 to vector<8x128xf32>
    %106 = arith.addf %105, %104 : vector<8x128xf32>
    %107 = arith.divf %105, %106 : vector<8x128xf32>
    %108 = vector.extract_strided_slice %101 {offsets = [0, 128], sizes = [8, 128], strides = [1, 1]} : vector<8x256xf32> to vector<8x128xf32>
    %109 = arith.negf %108 : vector<8x128xf32>
    %110 = math.exp %109 : vector<8x128xf32>
    %cst_28 = arith.constant 1.000000e+00 : f32
    %111 = vector.broadcast %cst_28 : f32 to vector<8x128xf32>
    %112 = arith.addf %111, %110 : vector<8x128xf32>
    %113 = arith.divf %111, %112 : vector<8x128xf32>
    %114 = vector.extract_strided_slice %94 {offsets = [0, 256], sizes = [8, 128], strides = [1, 1]} : vector<8x384xf32> to vector<8x128xf32>
    %115 = vector.extract_strided_slice %98 {offsets = [0, 256], sizes = [8, 128], strides = [1, 1]} : vector<8x384xf32> to vector<8x128xf32>
    %116 = arith.mulf %107, %115 : vector<8x128xf32>
    %117 = arith.addf %114, %116 : vector<8x128xf32>
    %118 = math.tanh %117 : vector<8x128xf32>
    %119 = arith.subf %93, %118 : vector<8x128xf32>
    %120 = arith.mulf %113, %119 : vector<8x128xf32>
    %121 = arith.addf %118, %120 : vector<8x128xf32>
    %c32 = arith.constant 32 : index
    %c0_29 = arith.constant 0 : index
    %122 = vector.load %arg17[%c32, %c0_29] : memref<64x384xf32, #tpu.memory_space<vmem>>, vector<8x384xf32>
    %123 = arith.truncf %121 : vector<8x128xf32> to vector<8x128xbf16>
    %cst_30 = arith.constant dense<0.000000e+00> : vector<8x384xf32>
    %124 = tpu.matmul %123, %7, %cst_30 {dimension_numbers = #tpu.dot_dimension_numbers<[1], [0], [0], [1], [0, 0, 1, 1], [], []>} : vector<8x128xbf16>, vector<128x384xbf16>, vector<8x384xf32> -> vector<8x384xf32>
    %125 = vector.broadcast %8 : vector<1x384xf32> to vector<8x384xf32>
    %126 = arith.addf %124, %125 : vector<8x384xf32>
    %127 = vector.extract_strided_slice %122 {offsets = [0, 0], sizes = [8, 256], strides = [1, 1]} : vector<8x384xf32> to vector<8x256xf32>
    %128 = vector.extract_strided_slice %126 {offsets = [0, 0], sizes = [8, 256], strides = [1, 1]} : vector<8x384xf32> to vector<8x256xf32>
    %129 = arith.addf %127, %128 : vector<8x256xf32>
    %130 = vector.extract_strided_slice %129 {offsets = [0, 0], sizes = [8, 128], strides = [1, 1]} : vector<8x256xf32> to vector<8x128xf32>
    %131 = arith.negf %130 : vector<8x128xf32>
    %132 = math.exp %131 : vector<8x128xf32>
    %cst_31 = arith.constant 1.000000e+00 : f32
    %133 = vector.broadcast %cst_31 : f32 to vector<8x128xf32>
    %134 = arith.addf %133, %132 : vector<8x128xf32>
    %135 = arith.divf %133, %134 : vector<8x128xf32>
    %136 = vector.extract_strided_slice %129 {offsets = [0, 128], sizes = [8, 128], strides = [1, 1]} : vector<8x256xf32> to vector<8x128xf32>
    %137 = arith.negf %136 : vector<8x128xf32>
    %138 = math.exp %137 : vector<8x128xf32>
    %cst_32 = arith.constant 1.000000e+00 : f32
    %139 = vector.broadcast %cst_32 : f32 to vector<8x128xf32>
    %140 = arith.addf %139, %138 : vector<8x128xf32>
    %141 = arith.divf %139, %140 : vector<8x128xf32>
    %142 = vector.extract_strided_slice %122 {offsets = [0, 256], sizes = [8, 128], strides = [1, 1]} : vector<8x384xf32> to vector<8x128xf32>
    %143 = vector.extract_strided_slice %126 {offsets = [0, 256], sizes = [8, 128], strides = [1, 1]} : vector<8x384xf32> to vector<8x128xf32>
    %144 = arith.mulf %135, %143 : vector<8x128xf32>
    %145 = arith.addf %142, %144 : vector<8x128xf32>
    %146 = math.tanh %145 : vector<8x128xf32>
    %147 = arith.subf %121, %146 : vector<8x128xf32>
    %148 = arith.mulf %141, %147 : vector<8x128xf32>
    %149 = arith.addf %146, %148 : vector<8x128xf32>
    %c40 = arith.constant 40 : index
    %c0_33 = arith.constant 0 : index
    %150 = vector.load %arg17[%c40, %c0_33] : memref<64x384xf32, #tpu.memory_space<vmem>>, vector<8x384xf32>
    %151 = arith.truncf %149 : vector<8x128xf32> to vector<8x128xbf16>
    %cst_34 = arith.constant dense<0.000000e+00> : vector<8x384xf32>
    %152 = tpu.matmul %151, %7, %cst_34 {dimension_numbers = #tpu.dot_dimension_numbers<[1], [0], [0], [1], [0, 0, 1, 1], [], []>} : vector<8x128xbf16>, vector<128x384xbf16>, vector<8x384xf32> -> vector<8x384xf32>
    %153 = vector.broadcast %8 : vector<1x384xf32> to vector<8x384xf32>
    %154 = arith.addf %152, %153 : vector<8x384xf32>
    %155 = vector.extract_strided_slice %150 {offsets = [0, 0], sizes = [8, 256], strides = [1, 1]} : vector<8x384xf32> to vector<8x256xf32>
    %156 = vector.extract_strided_slice %154 {offsets = [0, 0], sizes = [8, 256], strides = [1, 1]} : vector<8x384xf32> to vector<8x256xf32>
    %157 = arith.addf %155, %156 : vector<8x256xf32>
    %158 = vector.extract_strided_slice %157 {offsets = [0, 0], sizes = [8, 128], strides = [1, 1]} : vector<8x256xf32> to vector<8x128xf32>
    %159 = arith.negf %158 : vector<8x128xf32>
    %160 = math.exp %159 : vector<8x128xf32>
    %cst_35 = arith.constant 1.000000e+00 : f32
    %161 = vector.broadcast %cst_35 : f32 to vector<8x128xf32>
    %162 = arith.addf %161, %160 : vector<8x128xf32>
    %163 = arith.divf %161, %162 : vector<8x128xf32>
    %164 = vector.extract_strided_slice %157 {offsets = [0, 128], sizes = [8, 128], strides = [1, 1]} : vector<8x256xf32> to vector<8x128xf32>
    %165 = arith.negf %164 : vector<8x128xf32>
    %166 = math.exp %165 : vector<8x128xf32>
    %cst_36 = arith.constant 1.000000e+00 : f32
    %167 = vector.broadcast %cst_36 : f32 to vector<8x128xf32>
    %168 = arith.addf %167, %166 : vector<8x128xf32>
    %169 = arith.divf %167, %168 : vector<8x128xf32>
    %170 = vector.extract_strided_slice %150 {offsets = [0, 256], sizes = [8, 128], strides = [1, 1]} : vector<8x384xf32> to vector<8x128xf32>
    %171 = vector.extract_strided_slice %154 {offsets = [0, 256], sizes = [8, 128], strides = [1, 1]} : vector<8x384xf32> to vector<8x128xf32>
    %172 = arith.mulf %163, %171 : vector<8x128xf32>
    %173 = arith.addf %170, %172 : vector<8x128xf32>
    %174 = math.tanh %173 : vector<8x128xf32>
    %175 = arith.subf %149, %174 : vector<8x128xf32>
    %176 = arith.mulf %169, %175 : vector<8x128xf32>
    %177 = arith.addf %174, %176 : vector<8x128xf32>
    %c48 = arith.constant 48 : index
    %c0_37 = arith.constant 0 : index
    %178 = vector.load %arg17[%c48, %c0_37] : memref<64x384xf32, #tpu.memory_space<vmem>>, vector<8x384xf32>
    %179 = arith.truncf %177 : vector<8x128xf32> to vector<8x128xbf16>
    %cst_38 = arith.constant dense<0.000000e+00> : vector<8x384xf32>
    %180 = tpu.matmul %179, %7, %cst_38 {dimension_numbers = #tpu.dot_dimension_numbers<[1], [0], [0], [1], [0, 0, 1, 1], [], []>} : vector<8x128xbf16>, vector<128x384xbf16>, vector<8x384xf32> -> vector<8x384xf32>
    %181 = vector.broadcast %8 : vector<1x384xf32> to vector<8x384xf32>
    %182 = arith.addf %180, %181 : vector<8x384xf32>
    %183 = vector.extract_strided_slice %178 {offsets = [0, 0], sizes = [8, 256], strides = [1, 1]} : vector<8x384xf32> to vector<8x256xf32>
    %184 = vector.extract_strided_slice %182 {offsets = [0, 0], sizes = [8, 256], strides = [1, 1]} : vector<8x384xf32> to vector<8x256xf32>
    %185 = arith.addf %183, %184 : vector<8x256xf32>
    %186 = vector.extract_strided_slice %185 {offsets = [0, 0], sizes = [8, 128], strides = [1, 1]} : vector<8x256xf32> to vector<8x128xf32>
    %187 = arith.negf %186 : vector<8x128xf32>
    %188 = math.exp %187 : vector<8x128xf32>
    %cst_39 = arith.constant 1.000000e+00 : f32
    %189 = vector.broadcast %cst_39 : f32 to vector<8x128xf32>
    %190 = arith.addf %189, %188 : vector<8x128xf32>
    %191 = arith.divf %189, %190 : vector<8x128xf32>
    %192 = vector.extract_strided_slice %185 {offsets = [0, 128], sizes = [8, 128], strides = [1, 1]} : vector<8x256xf32> to vector<8x128xf32>
    %193 = arith.negf %192 : vector<8x128xf32>
    %194 = math.exp %193 : vector<8x128xf32>
    %cst_40 = arith.constant 1.000000e+00 : f32
    %195 = vector.broadcast %cst_40 : f32 to vector<8x128xf32>
    %196 = arith.addf %195, %194 : vector<8x128xf32>
    %197 = arith.divf %195, %196 : vector<8x128xf32>
    %198 = vector.extract_strided_slice %178 {offsets = [0, 256], sizes = [8, 128], strides = [1, 1]} : vector<8x384xf32> to vector<8x128xf32>
    %199 = vector.extract_strided_slice %182 {offsets = [0, 256], sizes = [8, 128], strides = [1, 1]} : vector<8x384xf32> to vector<8x128xf32>
    %200 = arith.mulf %191, %199 : vector<8x128xf32>
    %201 = arith.addf %198, %200 : vector<8x128xf32>
    %202 = math.tanh %201 : vector<8x128xf32>
    %203 = arith.subf %177, %202 : vector<8x128xf32>
    %204 = arith.mulf %197, %203 : vector<8x128xf32>
    %205 = arith.addf %202, %204 : vector<8x128xf32>
    %c56 = arith.constant 56 : index
    %c0_41 = arith.constant 0 : index
    %206 = vector.load %arg17[%c56, %c0_41] : memref<64x384xf32, #tpu.memory_space<vmem>>, vector<8x384xf32>
    %207 = arith.truncf %205 : vector<8x128xf32> to vector<8x128xbf16>
    %cst_42 = arith.constant dense<0.000000e+00> : vector<8x384xf32>
    %208 = tpu.matmul %207, %7, %cst_42 {dimension_numbers = #tpu.dot_dimension_numbers<[1], [0], [0], [1], [0, 0, 1, 1], [], []>} : vector<8x128xbf16>, vector<128x384xbf16>, vector<8x384xf32> -> vector<8x384xf32>
    %209 = vector.broadcast %8 : vector<1x384xf32> to vector<8x384xf32>
    %210 = arith.addf %208, %209 : vector<8x384xf32>
    %211 = vector.extract_strided_slice %206 {offsets = [0, 0], sizes = [8, 256], strides = [1, 1]} : vector<8x384xf32> to vector<8x256xf32>
    %212 = vector.extract_strided_slice %210 {offsets = [0, 0], sizes = [8, 256], strides = [1, 1]} : vector<8x384xf32> to vector<8x256xf32>
    %213 = arith.addf %211, %212 : vector<8x256xf32>
    %214 = vector.extract_strided_slice %213 {offsets = [0, 0], sizes = [8, 128], strides = [1, 1]} : vector<8x256xf32> to vector<8x128xf32>
    %215 = arith.negf %214 : vector<8x128xf32>
    %216 = math.exp %215 : vector<8x128xf32>
    %cst_43 = arith.constant 1.000000e+00 : f32
    %217 = vector.broadcast %cst_43 : f32 to vector<8x128xf32>
    %218 = arith.addf %217, %216 : vector<8x128xf32>
    %219 = arith.divf %217, %218 : vector<8x128xf32>
    %220 = vector.extract_strided_slice %213 {offsets = [0, 128], sizes = [8, 128], strides = [1, 1]} : vector<8x256xf32> to vector<8x128xf32>
    %221 = arith.negf %220 : vector<8x128xf32>
    %222 = math.exp %221 : vector<8x128xf32>
    %cst_44 = arith.constant 1.000000e+00 : f32
    %223 = vector.broadcast %cst_44 : f32 to vector<8x128xf32>
    %224 = arith.addf %223, %222 : vector<8x128xf32>
    %225 = arith.divf %223, %224 : vector<8x128xf32>
    %226 = vector.extract_strided_slice %206 {offsets = [0, 256], sizes = [8, 128], strides = [1, 1]} : vector<8x384xf32> to vector<8x128xf32>
    %227 = vector.extract_strided_slice %210 {offsets = [0, 256], sizes = [8, 128], strides = [1, 1]} : vector<8x384xf32> to vector<8x128xf32>
    %228 = arith.mulf %219, %227 : vector<8x128xf32>
    %229 = arith.addf %226, %228 : vector<8x128xf32>
    %230 = math.tanh %229 : vector<8x128xf32>
    %231 = arith.subf %205, %230 : vector<8x128xf32>
    %232 = arith.mulf %225, %231 : vector<8x128xf32>
    %233 = arith.addf %230, %232 : vector<8x128xf32>
    %c0_45 = arith.constant 0 : index
    %c0_46 = arith.constant 0 : index
    %234 = vector.load %arg9[%c0_45, %c0_46] : memref<1x128xf32, #tpu.memory_space<vmem>>, vector<1x128xf32>
    %cst_47 = arith.constant 9.99999974E-6 : f32
    %235 = vector.broadcast %cst_47 : f32 to vector<1x128xf32>
    %236 = arith.addf %234, %235 : vector<1x128xf32>
    %237 = math.rsqrt %236 : vector<1x128xf32>
    %c0_48 = arith.constant 0 : index
    %c0_49 = arith.constant 0 : index
    %238 = vector.load %arg8[%c0_48, %c0_49] : memref<1x128xf32, #tpu.memory_space<vmem>>, vector<1x128xf32>
    %239 = vector.broadcast %238 : vector<1x128xf32> to vector<8x128xf32>
    %240 = arith.subf %233, %239 : vector<8x128xf32>
    %241 = vector.broadcast %237 : vector<1x128xf32> to vector<8x128xf32>
    %242 = arith.mulf %240, %241 : vector<8x128xf32>
    %c0_50 = arith.constant 0 : index
    %c0_51 = arith.constant 0 : index
    %243 = vector.load %arg6[%c0_50, %c0_51] : memref<1x128xf32, #tpu.memory_space<vmem>>, vector<1x128xf32>
    %244 = vector.broadcast %243 : vector<1x128xf32> to vector<8x128xf32>
    %245 = arith.mulf %242, %244 : vector<8x128xf32>
    %c0_52 = arith.constant 0 : index
    %c0_53 = arith.constant 0 : index
    %246 = vector.load %arg7[%c0_52, %c0_53] : memref<1x128xf32, #tpu.memory_space<vmem>>, vector<1x128xf32>
    %247 = vector.broadcast %246 : vector<1x128xf32> to vector<8x128xf32>
    %248 = arith.addf %245, %247 : vector<8x128xf32>
    %c0_54 = arith.constant 0 : index
    %c0_55 = arith.constant 0 : index
    %249 = vector.load %arg10[%c0_54, %c0_55] : memref<128x128xf32, #tpu.memory_space<vmem>>, vector<128x128xf32>
    %cst_56 = arith.constant dense<0.000000e+00> : vector<8x128xf32>
    %250 = tpu.matmul %248, %249, %cst_56 {dimension_numbers = #tpu.dot_dimension_numbers<[1], [0], [0], [1], [0, 0, 1, 1], [], []>} : vector<8x128xf32>, vector<128x128xf32>, vector<8x128xf32> -> vector<8x128xf32>
    %c0_57 = arith.constant 0 : index
    %c0_58 = arith.constant 0 : index
    %251 = vector.load %arg11[%c0_57, %c0_58] : memref<1x128xf32, #tpu.memory_space<vmem>>, vector<1x128xf32>
    %252 = vector.broadcast %251 : vector<1x128xf32> to vector<8x128xf32>
    %253 = arith.addf %250, %252 : vector<8x128xf32>
    %cst_59 = arith.constant 0.000000e+00 : f32
    %254 = vector.broadcast %cst_59 : f32 to vector<8x128xf32>
    %255 = arith.maximumf %253, %254 : vector<8x128xf32>
    %c0_60 = arith.constant 0 : index
    %c0_61 = arith.constant 0 : index
    %256 = vector.load %arg12[%c0_60, %c0_61] : memref<128x128xf32, #tpu.memory_space<vmem>>, vector<128x128xf32>
    %cst_62 = arith.constant dense<0.000000e+00> : vector<8x128xf32>
    %257 = tpu.matmul %255, %256, %cst_62 {dimension_numbers = #tpu.dot_dimension_numbers<[1], [0], [0], [1], [0, 0, 1, 1], [], []>} : vector<8x128xf32>, vector<128x128xf32>, vector<8x128xf32> -> vector<8x128xf32>
    %c0_63 = arith.constant 0 : index
    %c0_64 = arith.constant 0 : index
    %258 = vector.load %arg13[%c0_63, %c0_64] : memref<1x128xf32, #tpu.memory_space<vmem>>, vector<1x128xf32>
    %259 = vector.broadcast %258 : vector<1x128xf32> to vector<8x128xf32>
    %260 = arith.addf %257, %259 : vector<8x128xf32>
    %cst_65 = arith.constant 0.000000e+00 : f32
    %261 = vector.broadcast %cst_65 : f32 to vector<8x128xf32>
    %262 = arith.maximumf %260, %261 : vector<8x128xf32>
    %c0_66 = arith.constant 0 : index
    %c0_67 = arith.constant 0 : index
    %263 = vector.load %arg14[%c0_66, %c0_67] : memref<128x8xf32, #tpu.memory_space<vmem>>, vector<128x8xf32>
    %cst_68 = arith.constant dense<0.000000e+00> : vector<8x8xf32>
    %264 = tpu.matmul %262, %263, %cst_68 {dimension_numbers = #tpu.dot_dimension_numbers<[1], [0], [0], [1], [0, 0, 1, 1], [], []>} : vector<8x128xf32>, vector<128x8xf32>, vector<8x8xf32> -> vector<8x8xf32>
    %c0_69 = arith.constant 0 : index
    %c0_70 = arith.constant 0 : index
    %265 = vector.load %arg15[%c0_69, %c0_70] : memref<1x8xf32, #tpu.memory_space<vmem>>, vector<1x8xf32>
    %266 = vector.broadcast %265 : vector<1x8xf32> to vector<8x8xf32>
    %267 = arith.addf %264, %266 : vector<8x8xf32>
    %c0_71 = arith.constant 0 : index
    %c0_72 = arith.constant 0 : index
    %268 = vector.load %arg16[%c0_71, %c0_72] : memref<8x8xf32, #tpu.memory_space<vmem>>, vector<8x8xf32>
    tpu.vector_store %arg16[%c0_71, %c0_72], %267 {strides = array<i32>} : memref<8x8xf32, #tpu.memory_space<vmem>>, vector<8x8xf32>,
    return
  }
  func.func @transform_0(%arg0: i32) -> (i32, i32) {
    %c0_i32 = arith.constant 0 : i32
    %c0_i32_0 = arith.constant 0 : i32
    %c0_i32_1 = arith.constant 0 : i32
    return %c0_i32, %c0_i32_0 : i32, i32
  }
  func.func @transform_1(%arg0: i32) -> (i32, i32) {
    %c0_i32 = arith.constant 0 : i32
    %c0_i32_0 = arith.constant 0 : i32
    %c0_i32_1 = arith.constant 0 : i32
    return %c0_i32, %c0_i32_0 : i32, i32
  }
  func.func @transform_2(%arg0: i32) -> (i32, i32) {
    %c0_i32 = arith.constant 0 : i32
    %c0_i32_0 = arith.constant 0 : i32
    %c0_i32_1 = arith.constant 0 : i32
    return %c0_i32, %c0_i32_0 : i32, i32
  }
  func.func @transform_3(%arg0: i32) -> (i32, i32) {
    %c0_i32 = arith.constant 0 : i32
    %c0_i32_0 = arith.constant 0 : i32
    %c0_i32_1 = arith.constant 0 : i32
    return %c0_i32, %c0_i32_0 : i32, i32
  }
  func.func @transform_4(%arg0: i32) -> (i32, i32) {
    %c0_i32 = arith.constant 0 : i32
    %c0_i32_0 = arith.constant 0 : i32
    %c0_i32_1 = arith.constant 0 : i32
    return %c0_i32, %c0_i32_0 : i32, i32
  }
  func.func @transform_5(%arg0: i32) -> (i32, i32) {
    %c0_i32 = arith.constant 0 : i32
    %c0_i32_0 = arith.constant 0 : i32
    %c0_i32_1 = arith.constant 0 : i32
    return %c0_i32, %c0_i32_0 : i32, i32
  }
  func.func @transform_6(%arg0: i32) -> (i32, i32) {
    %c0_i32 = arith.constant 0 : i32
    %c0_i32_0 = arith.constant 0 : i32
    %c0_i32_1 = arith.constant 0 : i32
    return %c0_i32, %c0_i32_0 : i32, i32
  }
  func.func @transform_7(%arg0: i32) -> (i32, i32) {
    %c0_i32 = arith.constant 0 : i32
    %c0_i32_0 = arith.constant 0 : i32
    %c0_i32_1 = arith.constant 0 : i32
    return %c0_i32, %c0_i32_0 : i32, i32
  }
  func.func @transform_8(%arg0: i32) -> (i32, i32) {
    %c0_i32 = arith.constant 0 : i32
    %c0_i32_0 = arith.constant 0 : i32
    %c0_i32_1 = arith.constant 0 : i32
    return %c0_i32, %c0_i32_0 : i32, i32
  }
  func.func @transform_9(%arg0: i32) -> (i32, i32) {
    %c0_i32 = arith.constant 0 : i32
    %c0_i32_0 = arith.constant 0 : i32
    %c0_i32_1 = arith.constant 0 : i32
    return %c0_i32, %c0_i32_0 : i32, i32
  }
  func.func @transform_10(%arg0: i32) -> (i32, i32) {
    %c0_i32 = arith.constant 0 : i32
    %c0_i32_0 = arith.constant 0 : i32
    %c0_i32_1 = arith.constant 0 : i32
    return %c0_i32, %c0_i32_0 : i32, i32
  }
  func.func @transform_11(%arg0: i32) -> (i32, i32) {
    %c0_i32 = arith.constant 0 : i32
    %c0_i32_0 = arith.constant 0 : i32
    %c0_i32_1 = arith.constant 0 : i32
    return %c0_i32, %c0_i32_0 : i32, i32
  }
  func.func @transform_12(%arg0: i32) -> (i32, i32) {
    %c0_i32 = arith.constant 0 : i32
    %c0_i32_0 = arith.constant 0 : i32
    %c0_i32_1 = arith.constant 0 : i32
    return %c0_i32, %c0_i32_0 : i32, i32
  }
  func.func @transform_13(%arg0: i32) -> (i32, i32) {
    %c0_i32 = arith.constant 0 : i32
    %c0_i32_0 = arith.constant 0 : i32
    %c0_i32_1 = arith.constant 0 : i32
    return %c0_i32, %c0_i32_0 : i32, i32
  }
  func.func @transform_14(%arg0: i32) -> (i32, i32) {
    %c0_i32 = arith.constant 0 : i32
    %c0_i32_0 = arith.constant 0 : i32
    %c0_i32_1 = arith.constant 0 : i32
    return %c0_i32, %c0_i32_0 : i32, i32
  }
  func.func @transform_15(%arg0: i32) -> (i32, i32) {
    %c0_i32 = arith.constant 0 : i32
    %c0_i32_0 = arith.constant 0 : i32
    %c0_i32_1 = arith.constant 0 : i32
    return %c0_i32, %c0_i32_0 : i32, i32
  }
}

</mosaic_0001>

<llo_original>
// kernel: gru_forward.1
$region0: #{gru_forward.1}
  #allocation0 [shape = 'u32[]', space=smem, size = 0x4, offset = 0x4, fixed_abs, tag = 'smem constant byte address 0x4 - core index']
  #allocation1 [shape = 'u32[144,128]{1,0:T(1,128)}', space=vmem, size = 0x12000, scoped, tag = 'internal scratch']
  #allocation2 [shape = 'f32[64,384]{1,0:T(8,128)}', space=vmem, size = 0x18000, scoped, tag = 'scratch operand']
  %s0 = inlined_call_operand.vmem [shape: f32[64,32], index: 0, kind: input, shape index: {}]
  %s1 = inlined_call_operand.vmem [shape: f32[32,384], index: 1, kind: input, shape index: {}]
  %s2 = inlined_call_operand.vmem [shape: f32[1,384], index: 2, kind: input, shape index: {}]
  %s3 = inlined_call_operand.vmem [shape: bf16[128,384], index: 3, kind: input, shape index: {}]
  %s4 = inlined_call_operand.vmem [shape: f32[1,384], index: 4, kind: input, shape index: {}]
  %s5 = inlined_call_operand.vmem [shape: f32[1,128], index: 5, kind: input, shape index: {}]
  %s6 = inlined_call_operand.vmem [shape: f32[1,128], index: 6, kind: input, shape index: {}]
  %s7 = inlined_call_operand.vmem [shape: f32[1,128], index: 7, kind: input, shape index: {}]
  %s8 = inlined_call_operand.vmem [shape: f32[1,128], index: 8, kind: input, shape index: {}]
  %s9 = inlined_call_operand.vmem [shape: f32[128,128], index: 9, kind: input, shape index: {}]
  %s10 = inlined_call_operand.vmem [shape: f32[1,128], index: 10, kind: input, shape index: {}]
  %s11 = inlined_call_operand.vmem [shape: f32[128,128], index: 11, kind: input, shape index: {}]
  %s12 = inlined_call_operand.vmem [shape: f32[1,128], index: 12, kind: input, shape index: {}]
  %s13 = inlined_call_operand.vmem [shape: f32[128,8], index: 13, kind: input, shape index: {}]
  %s14 = inlined_call_operand.vmem [shape: f32[1,8], index: 14, kind: input, shape index: {}]
  %s15 = inlined_call_operand.hbm [shape: f32[8,8], index: 15, kind: output, shape index: {}]
  %s16 = sld [smem:[#allocation0]]
  $region70: #{gru_forward.1} parent=0
    _
  %s18 = ssub.s32 1, %s16
  %s19 = scalar_select 0, %s18, %s16
  $region1: #{gru_forward.1} parent=0
    #allocation3 [shape = 'u8[4096]{0}', space=vmem, size = 0x1000, scoped, tag = 'output window, operand 0, single buffered']
    #allocation4 [shape = 's32[1]{0}', space=sflag, size = 0x4, scoped, tag = 'scoped memory for gru_forward.1']
    %20 = vsyncpa [#allocation4], 0
    // Predicated region
    $region2: #{gru_forward.1} parent=1 // pred_check
      _
    $region3: #{gru_forward.1} parent=1 // pred_check_branch
      %22 = sbr.rel (0) target = $region5
    $region4: #{gru_forward.1} parent=1 // pred_region
      _
    $region5: #{gru_forward.1} parent=1 // pred_fallthru
      _
    // Predicated region
    $region6: #{gru_forward.1} parent=1 // pred_check
      _
    $region7: #{gru_forward.1} parent=1 // pred_check_branch
      %24 = sbr.rel (0) target = $region9
    $region8: #{gru_forward.1} parent=1 // pred_region
      _
    $region9: #{gru_forward.1} parent=1 // pred_fallthru
      _
    // Predicated region
    $region10: #{gru_forward.1} parent=1 // pred_check
      _
    $region11: #{gru_forward.1} parent=1 // pred_check_branch
      %26 = sbr.rel (0) target = $region13
    $region12: #{gru_forward.1} parent=1 // pred_region
      _
    $region13: #{gru_forward.1} parent=1 // pred_fallthru
      _
    // Predicated region
    $region14: #{gru_forward.1} parent=1 // pred_check
      _
    $region15: #{gru_forward.1} parent=1 // pred_check_branch
      %28 = sbr.rel (0) target = $region17
    $region16: #{gru_forward.1} parent=1 // pred_region
      _
    $region17: #{gru_forward.1} parent=1 // pred_fallthru
      _
    // Predicated region
    $region18: #{gru_forward.1} parent=1 // pred_check
      _
    $region19: #{gru_forward.1} parent=1 // pred_check_branch
      %30 = sbr.rel (0) target = $region21
    $region20: #{gru_forward.1} parent=1 // pred_region
      _
    $region21: #{gru_forward.1} parent=1 // pred_fallthru
      _
    // Predicated region
    $region22: #{gru_forward.1} parent=1 // pred_check
      _
    $region23: #{gru_forward.1} parent=1 // pred_check_branch
      %32 = sbr.rel (0) target = $region25
    $region24: #{gru_forward.1} parent=1 // pred_region
      _
    $region25: #{gru_forward.1} parent=1 // pred_fallthru
      _
    // Predicated region
    $region26: #{gru_forward.1} parent=1 // pred_check
      _
    $region27: #{gru_forward.1} parent=1 // pred_check_branch
      %34 = sbr.rel (0) target = $region29
    $region28: #{gru_forward.1} parent=1 // pred_region
      _
    $region29: #{gru_forward.1} parent=1 // pred_fallthru
      _
    // Predicated region
    $region30: #{gru_forward.1} parent=1 // pred_check
      _
    $region31: #{gru_forward.1} parent=1 // pred_check_branch
      %36 = sbr.rel (0) target = $region33
    $region32: #{gru_forward.1} parent=1 // pred_region
      _
    $region33: #{gru_forward.1} parent=1 // pred_fallthru
      _
    // Predicated region
    $region34: #{gru_forward.1} parent=1 // pred_check
      _
    $region35: #{gru_forward.1} parent=1 // pred_check_branch
      %38 = sbr.rel (0) target = $region37
    $region36: #{gru_forward.1} parent=1 // pred_region
      _
    $region37: #{gru_forward.1} parent=1 // pred_fallthru
      _
    // Predicated region
    $region38: #{gru_forward.1} parent=1 // pred_check
      _
    $region39: #{gru_forward.1} parent=1 // pred_check_branch
      %40 = sbr.rel (0) target = $region41
    $region40: #{gru_forward.1} parent=1 // pred_region
      _
    $region41: #{gru_forward.1} parent=1 // pred_fallthru
      _
    // Predicated region
    $region42: #{gru_forward.1} parent=1 // pred_check
      _
    $region43: #{gru_forward.1} parent=1 // pred_check_branch
      %42 = sbr.rel (0) target = $region45
    $region44: #{gru_forward.1} parent=1 // pred_region
      _
    $region45: #{gru_forward.1} parent=1 // pred_fallthru
      _
    // Predicated region
    $region46: #{gru_forward.1} parent=1 // pred_check
      _
    $region47: #{gru_forward.1} parent=1 // pred_check_branch
      %44 = sbr.rel (0) target = $region49
    $region48: #{gru_forward.1} parent=1 // pred_region
      _
    $region49: #{gru_forward.1} parent=1 // pred_fallthru
      _
    // Predicated region
    $region50: #{gru_forward.1} parent=1 // pred_check
      _
    $region51: #{gru_forward.1} parent=1 // pred_check_branch
      %46 = sbr.rel (0) target = $region53
    $region52: #{gru_forward.1} parent=1 // pred_region
      _
    $region53: #{gru_forward.1} parent=1 // pred_fallthru
      _
    // Predicated region
    $region54: #{gru_forward.1} parent=1 // pred_check
      _
    $region55: #{gru_forward.1} parent=1 // pred_check_branch
      %48 = sbr.rel (0) target = $region57
    $region56: #{gru_forward.1} parent=1 // pred_region
      _
    $region57: #{gru_forward.1} parent=1 // pred_fallthru
      _
    // Predicated region
    $region58: #{gru_forward.1} parent=1 // pred_check
      _
    $region59: #{gru_forward.1} parent=1 // pred_check_branch
      %50 = sbr.rel (0) target = $region61
    $region60: #{gru_forward.1} parent=1 // pred_region
      _
    $region61: #{gru_forward.1} parent=1 // pred_fallthru
      _
    %v52 = vld [vmem:[%s0] sm:$0xff]
    %v53 = vld [vmem:[%s0 + $0x8] sm:$0xff]
    %v54 = vld [vmem:[%s0 + $0x10] sm:$0xff]
    %v55 = vld [vmem:[%s0 + $0x18] sm:$0xff]
    %v56 = vld [vmem:[%s0 + $0x20] sm:$0xff]
    %v57 = vld [vmem:[%s0 + $0x28] sm:$0xff]
    %v58 = vld [vmem:[%s0 + $0x30] sm:$0xff]
    %v59 = vld [vmem:[%s0 + $0x38] sm:$0xff]
    %v60 = vld [vmem:[%s1] sm:$0xff]
    %v61 = vld [vmem:[%s1 + $0x8] sm:$0xff]
    %v62 = vld [vmem:[%s1 + $0x10] sm:$0xff]
    %v63 = vld [vmem:[%s1 + $0x18] sm:$0xff]
    %v64 = vld [vmem:[%s1 + $0x20] sm:$0xff]
    %v65 = vld [vmem:[%s1 + $0x28] sm:$0xff]
    %v66 = vld [vmem:[%s1 + $0x30] sm:$0xff]
    %v67 = vld [vmem:[%s1 + $0x38] sm:$0xff]
    %v68 = vld [vmem:[%s1 + $0x40] sm:$0xff]
    %v69 = vld [vmem:[%s1 + $0x48] sm:$0xff]
    %v70 = vld [vmem:[%s1 + $0x50] sm:$0xff]
    %v71 = vld [vmem:[%s1 + $0x58] sm:$0xff]
    %v72 = vld [vmem:[%s2] sm:$0x7]
    %v74 = vlaneseq
    %v75 = vshrl.u32 %v74, 7
    %v76 = vsub.s32 0, %v75
    %v77 = vrot.slane %v72, %v76
    %v78 = vlaneseq
    %v79 = vshrl.u32 %v78, 7
    %v80 = vsub.s32 1, %v79
    %v81 = vrot.slane %v72, %v80
    %v82 = vlaneseq
    %v83 = vshrl.u32 %v82, 7
    %v84 = vsub.s32 2, %v83
    %v85 = vrot.slane %v72, %v84
    %vm89 = vcmask 261120
    %v91 = vsel %vm89, %v52, 0
    %v94 = vsel %vm89, %v53, 0
    %v97 = vsel %vm89, %v54, 0
    %v100 = vsel %vm89, %v55, 0
    %v103 = vsel %vm89, %v56, 0
    %v106 = vsel %vm89, %v57, 0
    %v109 = vsel %vm89, %v58, 0
    %v112 = vsel %vm89, %v59, 0
    %114 = vmatprep.subr.mxu0 %v61
    %115 = vmatpush1.msra.mxu0 %v60
    %116 = vmatprep.subr.mxu0 %v64
    %117 = vmatpush1.msra.mxu0 %v63
    %118 = vmatprep.subr.mxu0 %v67
    %119 = vmatpush1.msra.mxu0 %v66
    %120 = vmatprep.subr.mxu0 %v70
    %121 = vmatpush1.msra.mxu0 %v69
    %122 = vmatprep.subr.mxu0 0.0
    %123 = vmatpush1.msra.mxu0 0.0
    %124 = vmatprep.subr.mxu0 0.0
    %125 = vmatpush1.msra.mxu0 0.0
    %126 = vmatprep.subr.mxu0 0.0
    %127 = vmatpush1.msra.mxu0 0.0
    %128 = vmatprep.subr.mxu0 0.0
    %129 = vmatpush1.msra.mxu0 0.0
    %130 = vmatprep.subr.mxu0 0.0
    %131 = vmatpush1.msra.mxu0 0.0
    %132 = vmatprep.subr.mxu0 0.0
    %133 = vmatpush1.msra.mxu0 0.0
    %134 = vmatprep.subr.mxu0 0.0
    %135 = vmatpush1.msra.mxu0 0.0
    %136 = vmatprep.subr.mxu0 0.0
    %137 = vmatpush1.msra.mxu0 0.0
    %138 = vmatprep.subr.mxu0 0.0
    %139 = vmatpush1.msra.mxu0 0.0
    %140 = vmatprep.subr.mxu0 0.0
    %141 = vmatpush1.msra.mxu0 0.0
    %142 = vmatprep.subr.mxu0 0.0
    %143 = vmatpush1.msra.mxu0 0.0
    %144 = vmatprep.subr.mxu0 0.0
    %145 = vmatpush1.msra.mxu0 0.0
    %146 = vmatprep.subr.mxu0 0.0
    %147 = vmatpush1.msra.mxu0 0.0
    %148 = vmatprep.subr.mxu0 0.0
    %149 = vmatpush1.msra.mxu0 0.0
    %150 = vmatprep.subr.mxu0 0.0
    %151 = vmatpush1.msra.mxu0 0.0
    %152 = vmatprep.subr.mxu0 0.0
    %153 = vmatpush1.msra.mxu0 0.0
    %154 = vmatprep.subr.mxu0 0.0
    %155 = vmatpush1.msra.mxu0 0.0
    %156 = vmatprep.subr.mxu0 0.0
    %157 = vmatpush1.msra.mxu0 0.0
    %158 = vmatprep.subr.mxu0 0.0
    %159 = vmatpush1.msra.mxu0 0.0
    %160 = vmatprep.subr.mxu0 0.0
    %161 = vmatpush1.msra.mxu0 0.0
    %162 = vmatprep.subr.mxu0 0.0
    %163 = vmatpush1.msra.mxu0 0.0
    %164 = vmatprep.subr.mxu0 0.0
    %165 = vmatpush1.msra.mxu0 0.0
    %166 = vmatprep.subr.mxu0 0.0
    %167 = vmatpush1.msra.mxu0 0.0
    %168 = vmatprep.subr.mxu0 0.0
    %169 = vmatpush1.msra.mxu0 0.0
    %170 = vmatprep.subr.mxu0 0.0
    %171 = vmatpush1.msra.mxu0 0.0
    %172 = vmatprep.subr.mxu0 0.0
    %173 = vmatpush1.msra.mxu0 0.0
    %174 = vmatprep.subr.mxu0 0.0
    %175 = vmatpush1.msra.mxu0 0.0
    %176 = vmatprep.subr.mxu0 0.0
    %177 = vmatpush1.msra.mxu0 0.0
    %178 = vmatprep.mubr.f32.mxu0 0.0
    %179 = vmatmul.mubr.f32.gmra.mrb[0].mxu0 %v91
    %v180 = vpop.f32.mrb[0].mxu0
    %v181 = vadd.f32 %v77, %v180
    %v182 = vpop.f32.mrb[0].mxu0
    %v183 = vadd.f32 %v81, %v182
    %184 = vmatprep.mubr.f32.mxu0 0.0
    %185 = vmatmul.mubr.f32.gmra.mrb[0].mxu0 %v94
    %v186 = vpop.f32.mrb[0].mxu0
    %v187 = vadd.f32 %v77, %v186
    %v188 = vpop.f32.mrb[0].mxu0
    %v189 = vadd.f32 %v81, %v188
    %190 = vmatprep.mubr.f32.mxu0 0.0
    %191 = vmatmul.mubr.f32.gmra.mrb[0].mxu0 %v97
    %v192 = vpop.f32.mrb[0].mxu0
    %v193 = vadd.f32 %v77, %v192
    %v194 = vpop.f32.mrb[0].mxu0
    %v195 = vadd.f32 %v81, %v194
    %196 = vmatprep.mubr.f32.mxu0 0.0
    %197 = vmatmul.mubr.f32.gmra.mrb[0].mxu0 %v100
    %v198 = vpop.f32.mrb[0].mxu0
    %v199 = vadd.f32 %v77, %v198
    %v200 = vpop.f32.mrb[0].mxu0
    %v201 = vadd.f32 %v81, %v200
    %202 = vmatprep.mubr.f32.mxu0 0.0
    %203 = vmatmul.mubr.f32.gmra.mrb[0].mxu0 %v103
    %v204 = vpop.f32.mrb[0].mxu0
    %v205 = vadd.f32 %v77, %v204
    %v206 = vpop.f32.mrb[0].mxu0
    %v207 = vadd.f32 %v81, %v206
    %208 = vmatprep.mubr.f32.mxu0 0.0
    %209 = vmatmul.mubr.f32.gmra.mrb[0].mxu0 %v106
    %v210 = vpop.f32.mrb[0].mxu0
    %v211 = vadd.f32 %v77, %v210
    %v212 = vpop.f32.mrb[0].mxu0
    %v213 = vadd.f32 %v81, %v212
    %214 = vmatprep.mubr.f32.mxu0 0.0
    %215 = vmatmul.mubr.f32.gmra.mrb[0].mxu0 %v109
    %v216 = vpop.f32.mrb[0].mxu0
    %v217 = vadd.f32 %v77, %v216
    %v218 = vpop.f32.mrb[0].mxu0
    %v219 = vadd.f32 %v81, %v218
    %220 = vmatprep.mubr.f32.mxu0 0.0
    %221 = vmatmul.mubr.f32.gmra.mrb[0].mxu0 %v112
    %v222 = vpop.f32.mrb[0].mxu0
    %v223 = vadd.f32 %v77, %v222
    %v224 = vpop.f32.mrb[0].mxu0
    %v225 = vadd.f32 %v81, %v224
    %226 = vdwg.mxu0
    %227 = vmatprep.subr.mxu0 0.0
    %228 = vmatpush1.msra.mxu0 %v62
    %229 = vmatprep.subr.mxu0 0.0
    %230 = vmatpush1.msra.mxu0 %v65
    %231 = vmatprep.subr.mxu0 0.0
    %232 = vmatpush1.msra.mxu0 %v68
    %233 = vmatprep.subr.mxu0 0.0
    %234 = vmatpush1.msra.mxu0 %v71
    %235 = vmatprep.subr.mxu0 0.0
    %236 = vmatpush1.msra.mxu0 0.0
    %237 = vmatprep.subr.mxu0 0.0
    %238 = vmatpush1.msra.mxu0 0.0
    %239 = vmatprep.subr.mxu0 0.0
    %240 = vmatpush1.msra.mxu0 0.0
    %241 = vmatprep.subr.mxu0 0.0
    %242 = vmatpush1.msra.mxu0 0.0
    %243 = vmatprep.subr.mxu0 0.0
    %244 = vmatpush1.msra.mxu0 0.0
    %245 = vmatprep.subr.mxu0 0.0
    %246 = vmatpush1.msra.mxu0 0.0
    %247 = vmatprep.subr.mxu0 0.0
    %248 = vmatpush1.msra.mxu0 0.0
    %249 = vmatprep.subr.mxu0 0.0
    %250 = vmatpush1.msra.mxu0 0.0
    %251 = vmatprep.subr.mxu0 0.0
    %252 = vmatpush1.msra.mxu0 0.0
    %253 = vmatprep.subr.mxu0 0.0
    %254 = vmatpush1.msra.mxu0 0.0
    %255 = vmatprep.subr.mxu0 0.0
    %256 = vmatpush1.msra.mxu0 0.0
    %257 = vmatprep.subr.mxu0 0.0
    %258 = vmatpush1.msra.mxu0 0.0
    %259 = vmatprep.subr.mxu0 0.0
    %260 = vmatpush1.msra.mxu0 0.0
    %261 = vmatprep.subr.mxu0 0.0
    %262 = vmatpush1.msra.mxu0 0.0
    %263 = vmatprep.subr.mxu0 0.0
    %264 = vmatpush1.msra.mxu0 0.0
    %265 = vmatprep.subr.mxu0 0.0
    %266 = vmatpush1.msra.mxu0 0.0
    %267 = vmatprep.subr.mxu0 0.0
    %268 = vmatpush1.msra.mxu0 0.0
    %269 = vmatprep.subr.mxu0 0.0
    %270 = vmatpush1.msra.mxu0 0.0
    %271 = vmatprep.subr.mxu0 0.0
    %272 = vmatpush1.msra.mxu0 0.0
    %273 = vmatprep.subr.mxu0 0.0
    %274 = vmatpush1.msra.mxu0 0.0
    %275 = vmatprep.subr.mxu0 0.0
    %276 = vmatpush1.msra.mxu0 0.0
    %277 = vmatprep.subr.mxu0 0.0
    %278 = vmatpush1.msra.mxu0 0.0
    %279 = vmatprep.subr.mxu0 0.0
    %280 = vmatpush1.msra.mxu0 0.0
    %281 = vmatprep.subr.mxu0 0.0
    %282 = vmatpush1.msra.mxu0 0.0
    %283 = vmatprep.subr.mxu0 0.0
    %284 = vmatpush1.msra.mxu0 0.0
    %285 = vmatprep.subr.mxu0 0.0
    %286 = vmatpush1.msra.mxu0 0.0
    %287 = vmatprep.subr.mxu0 0.0
    %288 = vmatpush1.msra.mxu0 0.0
    %289 = vmatprep.subr.mxu0 0.0
    %290 = vmatpush1.msra.mxu0 0.0
    %291 = vmatprep.mubr.f32.mxu0 0.0
    %292 = vmatmul.mubr.f32.gmra.mrb[0].mxu0 %v91
    %v293 = vpop.f32.mrb[0].mxu0
    %v294 = vadd.f32 %v85, %v293
    %v295 = vpop.f32.mrb[0].mxu0
    %296 = vmatprep.mubr.f32.mxu0 0.0
    %297 = vmatmul.mubr.f32.gmra.mrb[0].mxu0 %v94
    %v298 = vpop.f32.mrb[0].mxu0
    %v299 = vadd.f32 %v85, %v298
    %v300 = vpop.f32.mrb[0].mxu0
    %301 = vmatprep.mubr.f32.mxu0 0.0
    %302 = vmatmul.mubr.f32.gmra.mrb[0].mxu0 %v97
    %v303 = vpop.f32.mrb[0].mxu0
    %v304 = vadd.f32 %v85, %v303
    %v305 = vpop.f32.mrb[0].mxu0
    %306 = vmatprep.mubr.f32.mxu0 0.0
    %307 = vmatmul.mubr.f32.gmra.mrb[0].mxu0 %v100
    %v308 = vpop.f32.mrb[0].mxu0
    %v309 = vadd.f32 %v85, %v308
    %v310 = vpop.f32.mrb[0].mxu0
    %311 = vmatprep.mubr.f32.mxu0 0.0
    %312 = vmatmul.mubr.f32.gmra.mrb[0].mxu0 %v103
    %v313 = vpop.f32.mrb[0].mxu0
    %v314 = vadd.f32 %v85, %v313
    %v315 = vpop.f32.mrb[0].mxu0
    %316 = vmatprep.mubr.f32.mxu0 0.0
    %317 = vmatmul.mubr.f32.gmra.mrb[0].mxu0 %v106
    %v318 = vpop.f32.mrb[0].mxu0
    %v319 = vadd.f32 %v85, %v318
    %v320 = vpop.f32.mrb[0].mxu0
    %321 = vmatprep.mubr.f32.mxu0 0.0
    %322 = vmatmul.mubr.f32.gmra.mrb[0].mxu0 %v109
    %v323 = vpop.f32.mrb[0].mxu0
    %v324 = vadd.f32 %v85, %v323
    %v325 = vpop.f32.mrb[0].mxu0
    %326 = vmatprep.mubr.f32.mxu0 0.0
    %327 = vmatmul.mubr.f32.gmra.mrb[0].mxu0 %v112
    %v328 = vpop.f32.mrb[0].mxu0
    %v329 = vadd.f32 %v85, %v328
    %v330 = vpop.f32.mrb[0].mxu0
    %331 = vdwg.mxu0
    %332 = vst [vmem:[#allocation2] sm:$0xff] %v181
    %333 = vst [vmem:[#allocation2 + $0x8] sm:$0xff] %v183
    %334 = vst [vmem:[#allocation2 + $0x10] sm:$0xff] %v294
    %335 = vst [vmem:[#allocation2 + $0x18] sm:$0xff] %v187
    %336 = vst [vmem:[#allocation2 + $0x20] sm:$0xff] %v189
    %337 = vst [vmem:[#allocation2 + $0x28] sm:$0xff] %v299
    %338 = vst [vmem:[#allocation2 + $0x30] sm:$0xff] %v193
    %339 = vst [vmem:[#allocation2 + $0x38] sm:$0xff] %v195
    %340 = vst [vmem:[#allocation2 + $0x40] sm:$0xff] %v304
    %341 = vst [vmem:[#allocation2 + $0x48] sm:$0xff] %v199
    %342 = vst [vmem:[#allocation2 + $0x50] sm:$0xff] %v201
    %343 = vst [vmem:[#allocation2 + $0x58] sm:$0xff] %v309
    %344 = vst [vmem:[#allocation2 + $0x60] sm:$0xff] %v205
    %345 = vst [vmem:[#allocation2 + $0x68] sm:$0xff] %v207
    %346 = vst [vmem:[#allocation2 + $0x70] sm:$0xff] %v314
    %347 = vst [vmem:[#allocation2 + $0x78] sm:$0xff] %v211
    %348 = vst [vmem:[#allocation2 + $0x80] sm:$0xff] %v213
    %349 = vst [vmem:[#allocation2 + $0x88] sm:$0xff] %v319
    %350 = vst [vmem:[#allocation2 + $0x90] sm:$0xff] %v217
    %351 = vst [vmem:[#allocation2 + $0x98] sm:$0xff] %v219
    %352 = vst [vmem:[#allocation2 + $0xa0] sm:$0xff] %v324
    %353 = vst [vmem:[#allocation2 + $0xa8] sm:$0xff] %v223
    %354 = vst [vmem:[#allocation2 + $0xb0] sm:$0xff] %v225
    %355 = vst [vmem:[#allocation2 + $0xb8] sm:$0xff] %v329
    %v356 = vld [vmem:[%s3] sm:$0xff]
    %v357 = vld [vmem:[%s3 + $0x8] sm:$0xf]
    %v358 = vld [vmem:[%s3 + $0xc] sm:$0xff]
    %v359 = vld [vmem:[%s3 + $0x14] sm:$0xf]
    %v360 = vld [vmem:[%s3 + $0x18] sm:$0xff]
    %v361 = vld [vmem:[%s3 + $0x20] sm:$0xf]
    %v362 = vld [vmem:[%s3 + $0x24] sm:$0xff]
    %v363 = vld [vmem:[%s3 + $0x2c] sm:$0xf]
    %v364 = vld [vmem:[%s3 + $0x30] sm:$0xff]
    %v365 = vld [vmem:[%s3 + $0x38] sm:$0xf]
    %v366 = vld [vmem:[%s3 + $0x3c] sm:$0xff]
    %v367 = vld [vmem:[%s3 + $0x44] sm:$0xf]
    %v368 = vld [vmem:[%s3 + $0x48] sm:$0xff]
    %v369 = vld [vmem:[%s3 + $0x50] sm:$0xf]
    %v370 = vld [vmem:[%s3 + $0x54] sm:$0xff]
    %v371 = vld [vmem:[%s3 + $0x5c] sm:$0xf]
    %v372 = vld [vmem:[%s3 + $0x60] sm:$0xff]
    %v373 = vld [vmem:[%s3 + $0x68] sm:$0xf]
    %v374 = vld [vmem:[%s3 + $0x6c] sm:$0xff]
    %v375 = vld [vmem:[%s3 + $0x74] sm:$0xf]
    %v376 = vld [vmem:[%s3 + $0x78] sm:$0xff]
    %v377 = vld [vmem:[%s3 + $0x80] sm:$0xf]
    %v378 = vld [vmem:[%s3 + $0x84] sm:$0xff]
    %v379 = vld [vmem:[%s3 + $0x8c] sm:$0xf]
    %v380 = vld [vmem:[%s3 + $0x90] sm:$0xff]
    %v381 = vld [vmem:[%s3 + $0x98] sm:$0xf]
    %v382 = vld [vmem:[%s3 + $0x9c] sm:$0xff]
    %v383 = vld [vmem:[%s3 + $0xa4] sm:$0xf]
    %v384 = vld [vmem:[%s3 + $0xa8] sm:$0xff]
    %v385 = vld [vmem:[%s3 + $0xb0] sm:$0xf]
    %v386 = vld [vmem:[%s3 + $0xb4] sm:$0xff]
    %v387 = vld [vmem:[%s3 + $0xbc] sm:$0xf]
    %v388 = vld [vmem:[%s4] sm:$0x7]
    %v389 = vld [vmem:[#allocation2] sm:$0xff]
    %v390 = vld [vmem:[#allocation2 + $0x8] sm:$0xff]
    %v391 = vld [vmem:[#allocation2 + $0x10] sm:$0xff]
    %v393 = vlaneseq
    %v394 = vshrl.u32 %v393, 7
    %v395 = vsub.s32 0, %v394
    %v396 = vrot.slane %v388, %v395
    %v397 = vlaneseq
    %v398 = vshrl.u32 %v397, 7
    %v399 = vsub.s32 1, %v398
    %v400 = vrot.slane %v388, %v399
    %v401 = vlaneseq
    %v402 = vshrl.u32 %v401, 7
    %v403 = vsub.s32 2, %v402
    %v404 = vrot.slane %v388, %v403
    %v440 = vunpack.c.l.b16 %v356
    %v441 = vunpack.c.h.b16 %v356
    %v442 = vunpack.c.l.b16 %v357
    %v443 = vunpack.c.l.b16 %v358
    %v444 = vunpack.c.h.b16 %v358
    %v445 = vunpack.c.l.b16 %v359
    %v446 = vunpack.c.l.b16 %v360
    %v447 = vunpack.c.h.b16 %v360
    %v448 = vunpack.c.l.b16 %v361
    %v449 = vunpack.c.l.b16 %v362
    %v450 = vunpack.c.h.b16 %v362
    %v451 = vunpack.c.l.b16 %v363
    %v452 = vunpack.c.l.b16 %v364
    %v453 = vunpack.c.h.b16 %v364
    %v454 = vunpack.c.l.b16 %v365
    %v455 = vunpack.c.l.b16 %v366
    %v456 = vunpack.c.h.b16 %v366
    %v457 = vunpack.c.l.b16 %v367
    %v458 = vunpack.c.l.b16 %v368
    %v459 = vunpack.c.h.b16 %v368
    %v460 = vunpack.c.l.b16 %v369
    %v461 = vunpack.c.l.b16 %v370
    %v462 = vunpack.c.h.b16 %v370
    %v463 = vunpack.c.l.b16 %v371
    %v464 = vunpack.c.l.b16 %v372
    %v465 = vunpack.c.h.b16 %v372
    %v466 = vunpack.c.l.b16 %v373
    %v467 = vunpack.c.l.b16 %v374
    %v468 = vunpack.c.h.b16 %v374
    %v469 = vunpack.c.l.b16 %v375
    %v470 = vunpack.c.l.b16 %v376
    %v471 = vunpack.c.h.b16 %v376
    %v472 = vunpack.c.l.b16 %v377
    %v473 = vunpack.c.l.b16 %v378
    %v474 = vunpack.c.h.b16 %v378
    %v475 = vunpack.c.l.b16 %v379
    %v476 = vunpack.c.l.b16 %v380
    %v477 = vunpack.c.h.b16 %v380
    %v478 = vunpack.c.l.b16 %v381
    %v479 = vunpack.c.l.b16 %v382
    %v480 = vunpack.c.h.b16 %v382
    %v481 = vunpack.c.l.b16 %v383
    %v482 = vunpack.c.l.b16 %v384
    %v483 = vunpack.c.h.b16 %v384
    %v484 = vunpack.c.l.b16 %v385
    %v485 = vunpack.c.l.b16 %v386
    %v486 = vunpack.c.h.b16 %v386
    %v487 = vunpack.c.l.b16 %v387
    %v488 = vpack.c.b16 %v443, %v440
    %v489 = vpack.c.b16 %v444, %v441
    %v490 = vpack.c.b16 %v445, %v442
    %v491 = vpack.c.b16 %v449, %v446
    %v492 = vpack.c.b16 %v450, %v447
    %v493 = vpack.c.b16 %v451, %v448
    %v494 = vpack.c.b16 %v455, %v452
    %v495 = vpack.c.b16 %v456, %v453
    %v496 = vpack.c.b16 %v457, %v454
    %v497 = vpack.c.b16 %v461, %v458
    %v498 = vpack.c.b16 %v462, %v459
    %v499 = vpack.c.b16 %v463, %v460
    %v500 = vpack.c.b16 %v467, %v464
    %v501 = vpack.c.b16 %v468, %v465
    %v502 = vpack.c.b16 %v469, %v466
    %v503 = vpack.c.b16 %v473, %v470
    %v504 = vpack.c.b16 %v474, %v471
    %v505 = vpack.c.b16 %v475, %v472
    %v506 = vpack.c.b16 %v479, %v476
    %v507 = vpack.c.b16 %v480, %v477
    %v508 = vpack.c.b16 %v481, %v478
    %v509 = vpack.c.b16 %v485, %v482
    %v510 = vpack.c.b16 %v486, %v483
    %v511 = vpack.c.b16 %v487, %v484
    %536 = vmatprep.subr.bf16.mxu0 %v489
    %537 = vmatpush1.bf16.msra.mxu0 %v488
    %538 = vmatprep.subr.bf16.mxu0 %v492
    %539 = vmatpush1.bf16.msra.mxu0 %v491
    %540 = vmatprep.subr.bf16.mxu0 %v495
    %541 = vmatpush1.bf16.msra.mxu0 %v494
    %542 = vmatprep.subr.bf16.mxu0 %v498
    %543 = vmatpush1.bf16.msra.mxu0 %v497
    %544 = vmatprep.subr.bf16.mxu0 %v501
    %545 = vmatpush1.bf16.msra.mxu0 %v500
    %546 = vmatprep.subr.bf16.mxu0 %v504
    %547 = vmatpush1.bf16.msra.mxu0 %v503
    %548 = vmatprep.subr.bf16.mxu0 %v507
    %549 = vmatpush1.bf16.msra.mxu0 %v506
    %550 = vmatprep.subr.bf16.mxu0 %v510
    %551 = vmatpush1.bf16.msra.mxu0 %v509
    %552 = vmatprep.subr.bf16.mxu0 0
    %553 = vmatpush1.bf16.msra.mxu0 0
    %554 = vmatprep.subr.bf16.mxu0 0
    %555 = vmatpush1.bf16.msra.mxu0 0
    %556 = vmatprep.subr.bf16.mxu0 0
    %557 = vmatpush1.bf16.msra.mxu0 0
    %558 = vmatprep.subr.bf16.mxu0 0
    %559 = vmatpush1.bf16.msra.mxu0 0
    %560 = vmatprep.subr.bf16.mxu0 0
    %561 = vmatpush1.bf16.msra.mxu0 0
    %562 = vmatprep.subr.bf16.mxu0 0
    %563 = vmatpush1.bf16.msra.mxu0 0
    %564 = vmatprep.subr.bf16.mxu0 0
    %565 = vmatpush1.bf16.msra.mxu0 0
    %566 = vmatprep.subr.bf16.mxu0 0
    %567 = vmatpush1.bf16.msra.mxu0 0
    %568 = vmatprep.mubr.bf16.mxu0 0
    %569 = vmatmul.mubr.bf16.gmra.mrb[0].mxu0 0
    %v570 = vpop.f32.mrb[0].mxu0
    %v571 = vadd.f32 %v396, %v570
    %v572 = vpop.f32.mrb[0].mxu0
    %v573 = vadd.f32 %v400, %v572
    %v574 = vpop.f32.mrb[0].mxu0
    %v575 = vpop.f32.mrb[0].mxu0
    %576 = vdwg.mxu0
    %577 = vmatprep.subr.bf16.mxu0 0
    %578 = vmatpush1.bf16.msra.mxu0 %v490
    %579 = vmatprep.subr.bf16.mxu0 0
    %580 = vmatpush1.bf16.msra.mxu0 %v493
    %581 = vmatprep.subr.bf16.mxu0 0
    %582 = vmatpush1.bf16.msra.mxu0 %v496
    %583 = vmatprep.subr.bf16.mxu0 0
    %584 = vmatpush1.bf16.msra.mxu0 %v499
    %585 = vmatprep.subr.bf16.mxu0 0
    %586 = vmatpush1.bf16.msra.mxu0 %v502
    %587 = vmatprep.subr.bf16.mxu0 0
    %588 = vmatpush1.bf16.msra.mxu0 %v505
    %589 = vmatprep.subr.bf16.mxu0 0
    %590 = vmatpush1.bf16.msra.mxu0 %v508
    %591 = vmatprep.subr.bf16.mxu0 0
    %592 = vmatpush1.bf16.msra.mxu0 %v511
    %593 = vmatprep.subr.bf16.mxu0 0
    %594 = vmatpush1.bf16.msra.mxu0 0
    %595 = vmatprep.subr.bf16.mxu0 0
    %596 = vmatpush1.bf16.msra.mxu0 0
    %597 = vmatprep.subr.bf16.mxu0 0
    %598 = vmatpush1.bf16.msra.mxu0 0
    %599 = vmatprep.subr.bf16.mxu0 0
    %600 = vmatpush1.bf16.msra.mxu0 0
    %601 = vmatprep.subr.bf16.mxu0 0
    %602 = vmatpush1.bf16.msra.mxu0 0
    %603 = vmatprep.subr.bf16.mxu0 0
    %604 = vmatpush1.bf16.msra.mxu0 0
    %605 = vmatprep.subr.bf16.mxu0 0
    %606 = vmatpush1.bf16.msra.mxu0 0
    %607 = vmatprep.subr.bf16.mxu0 0
    %608 = vmatpush1.bf16.msra.mxu0 0
    %609 = vmatprep.mubr.bf16.mxu0 0
    %610 = vmatmul.mubr.bf16.gmra.mrb[0].mxu0 0
    %v611 = vpop.f32.mrb[0].mxu0
    %v612 = vadd.f32 %v404, %v611
    %v613 = vpop.f32.mrb[0].mxu0
    %v614 = vpop.f32.mrb[0].mxu0
    %v615 = vpop.f32.mrb[0].mxu0
    %616 = vdwg.mxu0
    %v617 = vadd.f32 %v389, %v571
    %v618 = vadd.f32 %v390, %v573
    %v619 = vxor.u32 %v617, 2147483648
    %v620 = vmul.f32 %v619, 1.442695
    %v621 = vpow.pop %v620
    %v622 = vadd.f32 %v621, 1.0
    %v623 = vrcp.pop %v622
    %v624 = vmul.f32 1.0, %v623
    %v625 = vxor.u32 %v618, 2147483648
    %v626 = vmul.f32 %v625, 1.442695
    %v627 = vpow.pop %v626
    %v628 = vadd.f32 %v627, 1.0
    %v629 = vrcp.pop %v628
    %v630 = vmul.f32 1.0, %v629
    %v631 = vmul.f32 %v624, %v612
    %v632 = vadd.f32 %v391, %v631
    %v633 = vtanh.pop %v632
    %v634 = vsub.f32 0.0, %v633
    %v635 = vmul.f32 %v630, %v634
    %v636 = vadd.f32 %v633, %v635
    %v637 = vld [vmem:[#allocation2 + $0x18] sm:$0xff]
    %v638 = vld [vmem:[#allocation2 + $0x20] sm:$0xff]
    %v639 = vld [vmem:[#allocation2 + $0x28] sm:$0xff]
    %v640 = vpack.c.bf16 %v636, %v636
    %641 = vmatprep.subr.bf16.mxu0 %v489
    %642 = vmatpush1.bf16.msra.mxu0 %v488
    %643 = vmatprep.subr.bf16.mxu0 %v492
    %644 = vmatpush1.bf16.msra.mxu0 %v491
    %645 = vmatprep.subr.bf16.mxu0 %v495
    %646 = vmatpush1.bf16.msra.mxu0 %v494
    %647 = vmatprep.subr.bf16.mxu0 %v498
    %648 = vmatpush1.bf16.msra.mxu0 %v497
    %649 = vmatprep.subr.bf16.mxu0 %v501
    %650 = vmatpush1.bf16.msra.mxu0 %v500
    %651 = vmatprep.subr.bf16.mxu0 %v504
    %652 = vmatpush1.bf16.msra.mxu0 %v503
    %653 = vmatprep.subr.bf16.mxu0 %v507
    %654 = vmatpush1.bf16.msra.mxu0 %v506
    %655 = vmatprep.subr.bf16.mxu0 %v510
    %656 = vmatpush1.bf16.msra.mxu0 %v509
    %657 = vmatprep.subr.bf16.mxu0 0
    %658 = vmatpush1.bf16.msra.mxu0 0
    %659 = vmatprep.subr.bf16.mxu0 0
    %660 = vmatpush1.bf16.msra.mxu0 0
    %661 = vmatprep.subr.bf16.mxu0 0
    %662 = vmatpush1.bf16.msra.mxu0 0
    %663 = vmatprep.subr.bf16.mxu0 0
    %664 = vmatpush1.bf16.msra.mxu0 0
    %665 = vmatprep.subr.bf16.mxu0 0
    %666 = vmatpush1.bf16.msra.mxu0 0
    %667 = vmatprep.subr.bf16.mxu0 0
    %668 = vmatpush1.bf16.msra.mxu0 0
    %669 = vmatprep.subr.bf16.mxu0 0
    %670 = vmatpush1.bf16.msra.mxu0 0
    %671 = vmatprep.subr.bf16.mxu0 0
    %672 = vmatpush1.bf16.msra.mxu0 0
    %673 = vmatprep.mubr.bf16.mxu0 0
    %674 = vmatmul.mubr.bf16.gmra.mrb[0].mxu0 %v640
    %v675 = vpop.f32.mrb[0].mxu0
    %v676 = vadd.f32 %v396, %v675
    %v677 = vpop.f32.mrb[0].mxu0
    %v678 = vadd.f32 %v400, %v677
    %v679 = vpop.f32.mrb[0].mxu0
    %v680 = vpop.f32.mrb[0].mxu0
    %681 = vdwg.mxu0
    %682 = vmatprep.subr.bf16.mxu0 0
    %683 = vmatpush1.bf16.msra.mxu0 %v490
    %684 = vmatprep.subr.bf16.mxu0 0
    %685 = vmatpush1.bf16.msra.mxu0 %v493
    %686 = vmatprep.subr.bf16.mxu0 0
    %687 = vmatpush1.bf16.msra.mxu0 %v496
    %688 = vmatprep.subr.bf16.mxu0 0
    %689 = vmatpush1.bf16.msra.mxu0 %v499
    %690 = vmatprep.subr.bf16.mxu0 0
    %691 = vmatpush1.bf16.msra.mxu0 %v502
    %692 = vmatprep.subr.bf16.mxu0 0
    %693 = vmatpush1.bf16.msra.mxu0 %v505
    %694 = vmatprep.subr.bf16.mxu0 0
    %695 = vmatpush1.bf16.msra.mxu0 %v508
    %696 = vmatprep.subr.bf16.mxu0 0
    %697 = vmatpush1.bf16.msra.mxu0 %v511
    %698 = vmatprep.subr.bf16.mxu0 0
    %699 = vmatpush1.bf16.msra.mxu0 0
    %700 = vmatprep.subr.bf16.mxu0 0
    %701 = vmatpush1.bf16.msra.mxu0 0
    %702 = vmatprep.subr.bf16.mxu0 0
    %703 = vmatpush1.bf16.msra.mxu0 0
    %704 = vmatprep.subr.bf16.mxu0 0
    %705 = vmatpush1.bf16.msra.mxu0 0
    %706 = vmatprep.subr.bf16.mxu0 0
    %707 = vmatpush1.bf16.msra.mxu0 0
    %708 = vmatprep.subr.bf16.mxu0 0
    %709 = vmatpush1.bf16.msra.mxu0 0
    %710 = vmatprep.subr.bf16.mxu0 0
    %711 = vmatpush1.bf16.msra.mxu0 0
    %712 = vmatprep.subr.bf16.mxu0 0
    %713 = vmatpush1.bf16.msra.mxu0 0
    %714 = vmatprep.mubr.bf16.mxu0 0
    %715 = vmatmul.mubr.bf16.gmra.mrb[0].mxu0 %v640
    %v716 = vpop.f32.mrb[0].mxu0
    %v717 = vadd.f32 %v404, %v716
    %v718 = vpop.f32.mrb[0].mxu0
    %v719 = vpop.f32.mrb[0].mxu0
    %v720 = vpop.f32.mrb[0].mxu0
    %721 = vdwg.mxu0
    %v722 = vadd.f32 %v637, %v676
    %v723 = vadd.f32 %v638, %v678
    %v724 = vxor.u32 %v722, 2147483648
    %v725 = vmul.f32 %v724, 1.442695
    %v726 = vpow.pop %v725
    %v727 = vadd.f32 %v726, 1.0
    %v728 = vrcp.pop %v727
    %v729 = vmul.f32 1.0, %v728
    %v730 = vxor.u32 %v723, 2147483648
    %v731 = vmul.f32 %v730, 1.442695
    %v732 = vpow.pop %v731
    %v733 = vadd.f32 %v732, 1.0
    %v734 = vrcp.pop %v733
    %v735 = vmul.f32 1.0, %v734
    %v736 = vmul.f32 %v729, %v717
    %v737 = vadd.f32 %v639, %v736
    %v738 = vtanh.pop %v737
    %v739 = vsub.f32 %v636, %v738
    %v740 = vmul.f32 %v735, %v739
    %v741 = vadd.f32 %v738, %v740
    %v742 = vld [vmem:[#allocation2 + $0x30] sm:$0xff]
    %v743 = vld [vmem:[#allocation2 + $0x38] sm:$0xff]
    %v744 = vld [vmem:[#allocation2 + $0x40] sm:$0xff]
    %v745 = vpack.c.bf16 %v741, %v741
    %746 = vmatprep.subr.bf16.mxu0 %v489
    %747 = vmatpush1.bf16.msra.mxu0 %v488
    %748 = vmatprep.subr.bf16.mxu0 %v492
    %749 = vmatpush1.bf16.msra.mxu0 %v491
    %750 = vmatprep.subr.bf16.mxu0 %v495
    %751 = vmatpush1.bf16.msra.mxu0 %v494
    %752 = vmatprep.subr.bf16.mxu0 %v498
    %753 = vmatpush1.bf16.msra.mxu0 %v497
    %754 = vmatprep.subr.bf16.mxu0 %v501
    %755 = vmatpush1.bf16.msra.mxu0 %v500
    %756 = vmatprep.subr.bf16.mxu0 %v504
    %757 = vmatpush1.bf16.msra.mxu0 %v503
    %758 = vmatprep.subr.bf16.mxu0 %v507
    %759 = vmatpush1.bf16.msra.mxu0 %v506
    %760 = vmatprep.subr.bf16.mxu0 %v510
    %761 = vmatpush1.bf16.msra.mxu0 %v509
    %762 = vmatprep.subr.bf16.mxu0 0
    %763 = vmatpush1.bf16.msra.mxu0 0
    %764 = vmatprep.subr.bf16.mxu0 0
    %765 = vmatpush1.bf16.msra.mxu0 0
    %766 = vmatprep.subr.bf16.mxu0 0
    %767 = vmatpush1.bf16.msra.mxu0 0
    %768 = vmatprep.subr.bf16.mxu0 0
    %769 = vmatpush1.bf16.msra.mxu0 0
    %770 = vmatprep.subr.bf16.mxu0 0
    %771 = vmatpush1.bf16.msra.mxu0 0
    %772 = vmatprep.subr.bf16.mxu0 0
    %773 = vmatpush1.bf16.msra.mxu0 0
    %774 = vmatprep.subr.bf16.mxu0 0
    %775 = vmatpush1.bf16.msra.mxu0 0
    %776 = vmatprep.subr.bf16.mxu0 0
    %777 = vmatpush1.bf16.msra.mxu0 0
    %778 = vmatprep.mubr.bf16.mxu0 0
    %779 = vmatmul.mubr.bf16.gmra.mrb[0].mxu0 %v745
    %v780 = vpop.f32.mrb[0].mxu0
    %v781 = vadd.f32 %v396, %v780
    %v782 = vpop.f32.mrb[0].mxu0
    %v783 = vadd.f32 %v400, %v782
    %v784 = vpop.f32.mrb[0].mxu0
    %v785 = vpop.f32.mrb[0].mxu0
    %786 = vdwg.mxu0
    %787 = vmatprep.subr.bf16.mxu0 0
    %788 = vmatpush1.bf16.msra.mxu0 %v490
    %789 = vmatprep.subr.bf16.mxu0 0
    %790 = vmatpush1.bf16.msra.mxu0 %v493
    %791 = vmatprep.subr.bf16.mxu0 0
    %792 = vmatpush1.bf16.msra.mxu0 %v496
    %793 = vmatprep.subr.bf16.mxu0 0
    %794 = vmatpush1.bf16.msra.mxu0 %v499
    %795 = vmatprep.subr.bf16.mxu0 0
    %796 = vmatpush1.bf16.msra.mxu0 %v502
    %797 = vmatprep.subr.bf16.mxu0 0
    %798 = vmatpush1.bf16.msra.mxu0 %v505
    %799 = vmatprep.subr.bf16.mxu0 0
    %800 = vmatpush1.bf16.msra.mxu0 %v508
    %801 = vmatprep.subr.bf16.mxu0 0
    %802 = vmatpush1.bf16.msra.mxu0 %v511
    %803 = vmatprep.subr.bf16.mxu0 0
    %804 = vmatpush1.bf16.msra.mxu0 0
    %805 = vmatprep.subr.bf16.mxu0 0
    %806 = vmatpush1.bf16.msra.mxu0 0
    %807 = vmatprep.subr.bf16.mxu0 0
    %808 = vmatpush1.bf16.msra.mxu0 0
    %809 = vmatprep.subr.bf16.mxu0 0
    %810 = vmatpush1.bf16.msra.mxu0 0
    %811 = vmatprep.subr.bf16.mxu0 0
    %812 = vmatpush1.bf16.msra.mxu0 0
    %813 = vmatprep.subr.bf16.mxu0 0
    %814 = vmatpush1.bf16.msra.mxu0 0
    %815 = vmatprep.subr.bf16.mxu0 0
    %816 = vmatpush1.bf16.msra.mxu0 0
    %817 = vmatprep.subr.bf16.mxu0 0
    %818 = vmatpush1.bf16.msra.mxu0 0
    %819 = vmatprep.mubr.bf16.mxu0 0
    %820 = vmatmul.mubr.bf16.gmra.mrb[0].mxu0 %v745
    %v821 = vpop.f32.mrb[0].mxu0
    %v822 = vadd.f32 %v404, %v821
    %v823 = vpop.f32.mrb[0].mxu0
    %v824 = vpop.f32.mrb[0].mxu0
    %v825 = vpop.f32.mrb[0].mxu0
    %826 = vdwg.mxu0
    %v827 = vadd.f32 %v742, %v781
    %v828 = vadd.f32 %v743, %v783
    %v829 = vxor.u32 %v827, 2147483648
    %v830 = vmul.f32 %v829, 1.442695
    %v831 = vpow.pop %v830
    %v832 = vadd.f32 %v831, 1.0
    %v833 = vrcp.pop %v832
    %v834 = vmul.f32 1.0, %v833
    %v835 = vxor.u32 %v828, 2147483648
    %v836 = vmul.f32 %v835, 1.442695
    %v837 = vpow.pop %v836
    %v838 = vadd.f32 %v837, 1.0
    %v839 = vrcp.pop %v838
    %v840 = vmul.f32 1.0, %v839
    %v841 = vmul.f32 %v834, %v822
    %v842 = vadd.f32 %v744, %v841
    %v843 = vtanh.pop %v842
    %v844 = vsub.f32 %v741, %v843
    %v845 = vmul.f32 %v840, %v844
    %v846 = vadd.f32 %v843, %v845
    %v847 = vld [vmem:[#allocation2 + $0x48] sm:$0xff]
    %v848 = vld [vmem:[#allocation2 + $0x50] sm:$0xff]
    %v849 = vld [vmem:[#allocation2 + $0x58] sm:$0xff]
    %v850 = vpack.c.bf16 %v846, %v846
    %851 = vmatprep.subr.bf16.mxu0 %v489
    %852 = vmatpush1.bf16.msra.mxu0 %v488
    %853 = vmatprep.subr.bf16.mxu0 %v492
    %854 = vmatpush1.bf16.msra.mxu0 %v491
    %855 = vmatprep.subr.bf16.mxu0 %v495
    %856 = vmatpush1.bf16.msra.mxu0 %v494
    %857 = vmatprep.subr.bf16.mxu0 %v498
    %858 = vmatpush1.bf16.msra.mxu0 %v497
    %859 = vmatprep.subr.bf16.mxu0 %v501
    %860 = vmatpush1.bf16.msra.mxu0 %v500
    %861 = vmatprep.subr.bf16.mxu0 %v504
    %862 = vmatpush1.bf16.msra.mxu0 %v503
    %863 = vmatprep.subr.bf16.mxu0 %v507
    %864 = vmatpush1.bf16.msra.mxu0 %v506
    %865 = vmatprep.subr.bf16.mxu0 %v510
    %866 = vmatpush1.bf16.msra.mxu0 %v509
    %867 = vmatprep.subr.bf16.mxu0 0
    %868 = vmatpush1.bf16.msra.mxu0 0
    %869 = vmatprep.subr.bf16.mxu0 0
    %870 = vmatpush1.bf16.msra.mxu0 0
    %871 = vmatprep.subr.bf16.mxu0 0
    %872 = vmatpush1.bf16.msra.mxu0 0
    %873 = vmatprep.subr.bf16.mxu0 0
    %874 = vmatpush1.bf16.msra.mxu0 0
    %875 = vmatprep.subr.bf16.mxu0 0
    %876 = vmatpush1.bf16.msra.mxu0 0
    %877 = vmatprep.subr.bf16.mxu0 0
    %878 = vmatpush1.bf16.msra.mxu0 0
    %879 = vmatprep.subr.bf16.mxu0 0
    %880 = vmatpush1.bf16.msra.mxu0 0
    %881 = vmatprep.subr.bf16.mxu0 0
    %882 = vmatpush1.bf16.msra.mxu0 0
    %883 = vmatprep.mubr.bf16.mxu0 0
    %884 = vmatmul.mubr.bf16.gmra.mrb[0].mxu0 %v850
    %v885 = vpop.f32.mrb[0].mxu0
    %v886 = vadd.f32 %v396, %v885
    %v887 = vpop.f32.mrb[0].mxu0
    %v888 = vadd.f32 %v400, %v887
    %v889 = vpop.f32.mrb[0].mxu0
    %v890 = vpop.f32.mrb[0].mxu0
    %891 = vdwg.mxu0
    %892 = vmatprep.subr.bf16.mxu0 0
    %893 = vmatpush1.bf16.msra.mxu0 %v490
    %894 = vmatprep.subr.bf16.mxu0 0
    %895 = vmatpush1.bf16.msra.mxu0 %v493
    %896 = vmatprep.subr.bf16.mxu0 0
    %897 = vmatpush1.bf16.msra.mxu0 %v496
    %898 = vmatprep.subr.bf16.mxu0 0
    %899 = vmatpush1.bf16.msra.mxu0 %v499
    %900 = vmatprep.subr.bf16.mxu0 0
    %901 = vmatpush1.bf16.msra.mxu0 %v502
    %902 = vmatprep.subr.bf16.mxu0 0
    %903 = vmatpush1.bf16.msra.mxu0 %v505
    %904 = vmatprep.subr.bf16.mxu0 0
    %905 = vmatpush1.bf16.msra.mxu0 %v508
    %906 = vmatprep.subr.bf16.mxu0 0
    %907 = vmatpush1.bf16.msra.mxu0 %v511
    %908 = vmatprep.subr.bf16.mxu0 0
    %909 = vmatpush1.bf16.msra.mxu0 0
    %910 = vmatprep.subr.bf16.mxu0 0
    %911 = vmatpush1.bf16.msra.mxu0 0
    %912 = vmatprep.subr.bf16.mxu0 0
    %913 = vmatpush1.bf16.msra.mxu0 0
    %914 = vmatprep.subr.bf16.mxu0 0
    %915 = vmatpush1.bf16.msra.mxu0 0
    %916 = vmatprep.subr.bf16.mxu0 0
    %917 = vmatpush1.bf16.msra.mxu0 0
    %918 = vmatprep.subr.bf16.mxu0 0
    %919 = vmatpush1.bf16.msra.mxu0 0
    %920 = vmatprep.subr.bf16.mxu0 0
    %921 = vmatpush1.bf16.msra.mxu0 0
    %922 = vmatprep.subr.bf16.mxu0 0
    %923 = vmatpush1.bf16.msra.mxu0 0
    %924 = vmatprep.mubr.bf16.mxu0 0
    %925 = vmatmul.mubr.bf16.gmra.mrb[0].mxu0 %v850
    %v926 = vpop.f32.mrb[0].mxu0
    %v927 = vadd.f32 %v404, %v926
    %v928 = vpop.f32.mrb[0].mxu0
    %v929 = vpop.f32.mrb[0].mxu0
    %v930 = vpop.f32.mrb[0].mxu0
    %931 = vdwg.mxu0
    %v932 = vadd.f32 %v847, %v886
    %v933 = vadd.f32 %v848, %v888
    %v934 = vxor.u32 %v932, 2147483648
    %v935 = vmul.f32 %v934, 1.442695
    %v936 = vpow.pop %v935
    %v937 = vadd.f32 %v936, 1.0
    %v938 = vrcp.pop %v937
    %v939 = vmul.f32 1.0, %v938
    %v940 = vxor.u32 %v933, 2147483648
    %v941 = vmul.f32 %v940, 1.442695
    %v942 = vpow.pop %v941
    %v943 = vadd.f32 %v942, 1.0
    %v944 = vrcp.pop %v943
    %v945 = vmul.f32 1.0, %v944
    %v946 = vmul.f32 %v939, %v927
    %v947 = vadd.f32 %v849, %v946
    %v948 = vtanh.pop %v947
    %v949 = vsub.f32 %v846, %v948
    %v950 = vmul.f32 %v945, %v949
    %v951 = vadd.f32 %v948, %v950
    %v952 = vld [vmem:[#allocation2 + $0x60] sm:$0xff]
    %v953 = vld [vmem:[#allocation2 + $0x68] sm:$0xff]
    %v954 = vld [vmem:[#allocation2 + $0x70] sm:$0xff]
    %v955 = vpack.c.bf16 %v951, %v951
    %956 = vmatprep.subr.bf16.mxu0 %v489
    %957 = vmatpush1.bf16.msra.mxu0 %v488
    %958 = vmatprep.subr.bf16.mxu0 %v492
    %959 = vmatpush1.bf16.msra.mxu0 %v491
    %960 = vmatprep.subr.bf16.mxu0 %v495
    %961 = vmatpush1.bf16.msra.mxu0 %v494
    %962 = vmatprep.subr.bf16.mxu0 %v498
    %963 = vmatpush1.bf16.msra.mxu0 %v497
    %964 = vmatprep.subr.bf16.mxu0 %v501
    %965 = vmatpush1.bf16.msra.mxu0 %v500
    %966 = vmatprep.subr.bf16.mxu0 %v504
    %967 = vmatpush1.bf16.msra.mxu0 %v503
    %968 = vmatprep.subr.bf16.mxu0 %v507
    %969 = vmatpush1.bf16.msra.mxu0 %v506
    %970 = vmatprep.subr.bf16.mxu0 %v510
    %971 = vmatpush1.bf16.msra.mxu0 %v509
    %972 = vmatprep.subr.bf16.mxu0 0
    %973 = vmatpush1.bf16.msra.mxu0 0
    %974 = vmatprep.subr.bf16.mxu0 0
    %975 = vmatpush1.bf16.msra.mxu0 0
    %976 = vmatprep.subr.bf16.mxu0 0
    %977 = vmatpush1.bf16.msra.mxu0 0
    %978 = vmatprep.subr.bf16.mxu0 0
    %979 = vmatpush1.bf16.msra.mxu0 0
    %980 = vmatprep.subr.bf16.mxu0 0
    %981 = vmatpush1.bf16.msra.mxu0 0
    %982 = vmatprep.subr.bf16.mxu0 0
    %983 = vmatpush1.bf16.msra.mxu0 0
    %984 = vmatprep.subr.bf16.mxu0 0
    %985 = vmatpush1.bf16.msra.mxu0 0
    %986 = vmatprep.subr.bf16.mxu0 0
    %987 = vmatpush1.bf16.msra.mxu0 0
    %988 = vmatprep.mubr.bf16.mxu0 0
    %989 = vmatmul.mubr.bf16.gmra.mrb[0].mxu0 %v955
    %v990 = vpop.f32.mrb[0].mxu0
    %v991 = vadd.f32 %v396, %v990
    %v992 = vpop.f32.mrb[0].mxu0
    %v993 = vadd.f32 %v400, %v992
    %v994 = vpop.f32.mrb[0].mxu0
    %v995 = vpop.f32.mrb[0].mxu0
    %996 = vdwg.mxu0
    %997 = vmatprep.subr.bf16.mxu0 0
    %998 = vmatpush1.bf16.msra.mxu0 %v490
    %999 = vmatprep.subr.bf16.mxu0 0
    %1000 = vmatpush1.bf16.msra.mxu0 %v493
    %1001 = vmatprep.subr.bf16.mxu0 0
    %1002 = vmatpush1.bf16.msra.mxu0 %v496
    %1003 = vmatprep.subr.bf16.mxu0 0
    %1004 = vmatpush1.bf16.msra.mxu0 %v499
    %1005 = vmatprep.subr.bf16.mxu0 0
    %1006 = vmatpush1.bf16.msra.mxu0 %v502
    %1007 = vmatprep.subr.bf16.mxu0 0
    %1008 = vmatpush1.bf16.msra.mxu0 %v505
    %1009 = vmatprep.subr.bf16.mxu0 0
    %1010 = vmatpush1.bf16.msra.mxu0 %v508
    %1011 = vmatprep.subr.bf16.mxu0 0
    %1012 = vmatpush1.bf16.msra.mxu0 %v511
    %1013 = vmatprep.subr.bf16.mxu0 0
    %1014 = vmatpush1.bf16.msra.mxu0 0
    %1015 = vmatprep.subr.bf16.mxu0 0
    %1016 = vmatpush1.bf16.msra.mxu0 0
    %1017 = vmatprep.subr.bf16.mxu0 0
    %1018 = vmatpush1.bf16.msra.mxu0 0
    %1019 = vmatprep.subr.bf16.mxu0 0
    %1020 = vmatpush1.bf16.msra.mxu0 0
    %1021 = vmatprep.subr.bf16.mxu0 0
    %1022 = vmatpush1.bf16.msra.mxu0 0
    %1023 = vmatprep.subr.bf16.mxu0 0
    %1024 = vmatpush1.bf16.msra.mxu0 0
    %1025 = vmatprep.subr.bf16.mxu0 0
    %1026 = vmatpush1.bf16.msra.mxu0 0
    %1027 = vmatprep.subr.bf16.mxu0 0
    %1028 = vmatpush1.bf16.msra.mxu0 0
    %1029 = vmatprep.mubr.bf16.mxu0 0
    %1030 = vmatmul.mubr.bf16.gmra.mrb[0].mxu0 %v955
    %v1031 = vpop.f32.mrb[0].mxu0
    %v1032 = vadd.f32 %v404, %v1031
    %v1033 = vpop.f32.mrb[0].mxu0
    %v1034 = vpop.f32.mrb[0].mxu0
    %v1035 = vpop.f32.mrb[0].mxu0
    %1036 = vdwg.mxu0
    %v1037 = vadd.f32 %v952, %v991
    %v1038 = vadd.f32 %v953, %v993
    %v1039 = vxor.u32 %v1037, 2147483648
    %v1040 = vmul.f32 %v1039, 1.442695
    %v1041 = vpow.pop %v1040
    %v1042 = vadd.f32 %v1041, 1.0
    %v1043 = vrcp.pop %v1042
    %v1044 = vmul.f32 1.0, %v1043
    %v1045 = vxor.u32 %v1038, 2147483648
    %v1046 = vmul.f32 %v1045, 1.442695
    %v1047 = vpow.pop %v1046
    %v1048 = vadd.f32 %v1047, 1.0
    %v1049 = vrcp.pop %v1048
    %v1050 = vmul.f32 1.0, %v1049
    %v1051 = vmul.f32 %v1044, %v1032
    %v1052 = vadd.f32 %v954, %v1051
    %v1053 = vtanh.pop %v1052
    %v1054 = vsub.f32 %v951, %v1053
    %v1055 = vmul.f32 %v1050, %v1054
    %v1056 = vadd.f32 %v1053, %v1055
    %v1057 = vld [vmem:[#allocation2 + $0x78] sm:$0xff]
    %v1058 = vld [vmem:[#allocation2 + $0x80] sm:$0xff]
    %v1059 = vld [vmem:[#allocation2 + $0x88] sm:$0xff]
    %v1060 = vpack.c.bf16 %v1056, %v1056
    %1061 = vmatprep.subr.bf16.mxu0 %v489
    %1062 = vmatpush1.bf16.msra.mxu0 %v488
    %1063 = vmatprep.subr.bf16.mxu0 %v492
    %1064 = vmatpush1.bf16.msra.mxu0 %v491
    %1065 = vmatprep.subr.bf16.mxu0 %v495
    %1066 = vmatpush1.bf16.msra.mxu0 %v494
    %1067 = vmatprep.subr.bf16.mxu0 %v498
    %1068 = vmatpush1.bf16.msra.mxu0 %v497
    %1069 = vmatprep.subr.bf16.mxu0 %v501
    %1070 = vmatpush1.bf16.msra.mxu0 %v500
    %1071 = vmatprep.subr.bf16.mxu0 %v504
    %1072 = vmatpush1.bf16.msra.mxu0 %v503
    %1073 = vmatprep.subr.bf16.mxu0 %v507
    %1074 = vmatpush1.bf16.msra.mxu0 %v506
    %1075 = vmatprep.subr.bf16.mxu0 %v510
    %1076 = vmatpush1.bf16.msra.mxu0 %v509
    %1077 = vmatprep.subr.bf16.mxu0 0
    %1078 = vmatpush1.bf16.msra.mxu0 0
    %1079 = vmatprep.subr.bf16.mxu0 0
    %1080 = vmatpush1.bf16.msra.mxu0 0
    %1081 = vmatprep.subr.bf16.mxu0 0
    %1082 = vmatpush1.bf16.msra.mxu0 0
    %1083 = vmatprep.subr.bf16.mxu0 0
    %1084 = vmatpush1.bf16.msra.mxu0 0
    %1085 = vmatprep.subr.bf16.mxu0 0
    %1086 = vmatpush1.bf16.msra.mxu0 0
    %1087 = vmatprep.subr.bf16.mxu0 0
    %1088 = vmatpush1.bf16.msra.mxu0 0
    %1089 = vmatprep.subr.bf16.mxu0 0
    %1090 = vmatpush1.bf16.msra.mxu0 0
    %1091 = vmatprep.subr.bf16.mxu0 0
    %1092 = vmatpush1.bf16.msra.mxu0 0
    %1093 = vmatprep.mubr.bf16.mxu0 0
    %1094 = vmatmul.mubr.bf16.gmra.mrb[0].mxu0 %v1060
    %v1095 = vpop.f32.mrb[0].mxu0
    %v1096 = vadd.f32 %v396, %v1095
    %v1097 = vpop.f32.mrb[0].mxu0
    %v1098 = vadd.f32 %v400, %v1097
    %v1099 = vpop.f32.mrb[0].mxu0
    %v1100 = vpop.f32.mrb[0].mxu0
    %1101 = vdwg.mxu0
    %1102 = vmatprep.subr.bf16.mxu0 0
    %1103 = vmatpush1.bf16.msra.mxu0 %v490
    %1104 = vmatprep.subr.bf16.mxu0 0
    %1105 = vmatpush1.bf16.msra.mxu0 %v493
    %1106 = vmatprep.subr.bf16.mxu0 0
    %1107 = vmatpush1.bf16.msra.mxu0 %v496
    %1108 = vmatprep.subr.bf16.mxu0 0
    %1109 = vmatpush1.bf16.msra.mxu0 %v499
    %1110 = vmatprep.subr.bf16.mxu0 0
    %1111 = vmatpush1.bf16.msra.mxu0 %v502
    %1112 = vmatprep.subr.bf16.mxu0 0
    %1113 = vmatpush1.bf16.msra.mxu0 %v505
    %1114 = vmatprep.subr.bf16.mxu0 0
    %1115 = vmatpush1.bf16.msra.mxu0 %v508
    %1116 = vmatprep.subr.bf16.mxu0 0
    %1117 = vmatpush1.bf16.msra.mxu0 %v511
    %1118 = vmatprep.subr.bf16.mxu0 0
    %1119 = vmatpush1.bf16.msra.mxu0 0
    %1120 = vmatprep.subr.bf16.mxu0 0
    %1121 = vmatpush1.bf16.msra.mxu0 0
    %1122 = vmatprep.subr.bf16.mxu0 0
    %1123 = vmatpush1.bf16.msra.mxu0 0
    %1124 = vmatprep.subr.bf16.mxu0 0
    %1125 = vmatpush1.bf16.msra.mxu0 0
    %1126 = vmatprep.subr.bf16.mxu0 0
    %1127 = vmatpush1.bf16.msra.mxu0 0
    %1128 = vmatprep.subr.bf16.mxu0 0
    %1129 = vmatpush1.bf16.msra.mxu0 0
    %1130 = vmatprep.subr.bf16.mxu0 0
    %1131 = vmatpush1.bf16.msra.mxu0 0
    %1132 = vmatprep.subr.bf16.mxu0 0
    %1133 = vmatpush1.bf16.msra.mxu0 0
    %1134 = vmatprep.mubr.bf16.mxu0 0
    %1135 = vmatmul.mubr.bf16.gmra.mrb[0].mxu0 %v1060
    %v1136 = vpop.f32.mrb[0].mxu0
    %v1137 = vadd.f32 %v404, %v1136
    %v1138 = vpop.f32.mrb[0].mxu0
    %v1139 = vpop.f32.mrb[0].mxu0
    %v1140 = vpop.f32.mrb[0].mxu0
    %1141 = vdwg.mxu0
    %v1142 = vadd.f32 %v1057, %v1096
    %v1143 = vadd.f32 %v1058, %v1098
    %v1144 = vxor.u32 %v1142, 2147483648
    %v1145 = vmul.f32 %v1144, 1.442695
    %v1146 = vpow.pop %v1145
    %v1147 = vadd.f32 %v1146, 1.0
    %v1148 = vrcp.pop %v1147
    %v1149 = vmul.f32 1.0, %v1148
    %v1150 = vxor.u32 %v1143, 2147483648
    %v1151 = vmul.f32 %v1150, 1.442695
    %v1152 = vpow.pop %v1151
    %v1153 = vadd.f32 %v1152, 1.0
    %v1154 = vrcp.pop %v1153
    %v1155 = vmul.f32 1.0, %v1154
    %v1156 = vmul.f32 %v1149, %v1137
    %v1157 = vadd.f32 %v1059, %v1156
    %v1158 = vtanh.pop %v1157
    %v1159 = vsub.f32 %v1056, %v1158
    %v1160 = vmul.f32 %v1155, %v1159
    %v1161 = vadd.f32 %v1158, %v1160
    %v1162 = vld [vmem:[#allocation2 + $0x90] sm:$0xff]
    %v1163 = vld [vmem:[#allocation2 + $0x98] sm:$0xff]
    %v1164 = vld [vmem:[#allocation2 + $0xa0] sm:$0xff]
    %v1165 = vpack.c.bf16 %v1161, %v1161
    %1166 = vmatprep.subr.bf16.mxu0 %v489
    %1167 = vmatpush1.bf16.msra.mxu0 %v488
    %1168 = vmatprep.subr.bf16.mxu0 %v492
    %1169 = vmatpush1.bf16.msra.mxu0 %v491
    %1170 = vmatprep.subr.bf16.mxu0 %v495
    %1171 = vmatpush1.bf16.msra.mxu0 %v494
    %1172 = vmatprep.subr.bf16.mxu0 %v498
    %1173 = vmatpush1.bf16.msra.mxu0 %v497
    %1174 = vmatprep.subr.bf16.mxu0 %v501
    %1175 = vmatpush1.bf16.msra.mxu0 %v500
    %1176 = vmatprep.subr.bf16.mxu0 %v504
    %1177 = vmatpush1.bf16.msra.mxu0 %v503
    %1178 = vmatprep.subr.bf16.mxu0 %v507
    %1179 = vmatpush1.bf16.msra.mxu0 %v506
    %1180 = vmatprep.subr.bf16.mxu0 %v510
    %1181 = vmatpush1.bf16.msra.mxu0 %v509
    %1182 = vmatprep.subr.bf16.mxu0 0
    %1183 = vmatpush1.bf16.msra.mxu0 0
    %1184 = vmatprep.subr.bf16.mxu0 0
    %1185 = vmatpush1.bf16.msra.mxu0 0
    %1186 = vmatprep.subr.bf16.mxu0 0
    %1187 = vmatpush1.bf16.msra.mxu0 0
    %1188 = vmatprep.subr.bf16.mxu0 0
    %1189 = vmatpush1.bf16.msra.mxu0 0
    %1190 = vmatprep.subr.bf16.mxu0 0
    %1191 = vmatpush1.bf16.msra.mxu0 0
    %1192 = vmatprep.subr.bf16.mxu0 0
    %1193 = vmatpush1.bf16.msra.mxu0 0
    %1194 = vmatprep.subr.bf16.mxu0 0
    %1195 = vmatpush1.bf16.msra.mxu0 0
    %1196 = vmatprep.subr.bf16.mxu0 0
    %1197 = vmatpush1.bf16.msra.mxu0 0
    %1198 = vmatprep.mubr.bf16.mxu0 0
    %1199 = vmatmul.mubr.bf16.gmra.mrb[0].mxu0 %v1165
    %v1200 = vpop.f32.mrb[0].mxu0
    %v1201 = vadd.f32 %v396, %v1200
    %v1202 = vpop.f32.mrb[0].mxu0
    %v1203 = vadd.f32 %v400, %v1202
    %v1204 = vpop.f32.mrb[0].mxu0
    %v1205 = vpop.f32.mrb[0].mxu0
    %1206 = vdwg.mxu0
    %1207 = vmatprep.subr.bf16.mxu0 0
    %1208 = vmatpush1.bf16.msra.mxu0 %v490
    %1209 = vmatprep.subr.bf16.mxu0 0
    %1210 = vmatpush1.bf16.msra.mxu0 %v493
    %1211 = vmatprep.subr.bf16.mxu0 0
    %1212 = vmatpush1.bf16.msra.mxu0 %v496
    %1213 = vmatprep.subr.bf16.mxu0 0
    %1214 = vmatpush1.bf16.msra.mxu0 %v499
    %1215 = vmatprep.subr.bf16.mxu0 0
    %1216 = vmatpush1.bf16.msra.mxu0 %v502
    %1217 = vmatprep.subr.bf16.mxu0 0
    %1218 = vmatpush1.bf16.msra.mxu0 %v505
    %1219 = vmatprep.subr.bf16.mxu0 0
    %1220 = vmatpush1.bf16.msra.mxu0 %v508
    %1221 = vmatprep.subr.bf16.mxu0 0
    %1222 = vmatpush1.bf16.msra.mxu0 %v511
    %1223 = vmatprep.subr.bf16.mxu0 0
    %1224 = vmatpush1.bf16.msra.mxu0 0
    %1225 = vmatprep.subr.bf16.mxu0 0
    %1226 = vmatpush1.bf16.msra.mxu0 0
    %1227 = vmatprep.subr.bf16.mxu0 0
    %1228 = vmatpush1.bf16.msra.mxu0 0
    %1229 = vmatprep.subr.bf16.mxu0 0
    %1230 = vmatpush1.bf16.msra.mxu0 0
    %1231 = vmatprep.subr.bf16.mxu0 0
    %1232 = vmatpush1.bf16.msra.mxu0 0
    %1233 = vmatprep.subr.bf16.mxu0 0
    %1234 = vmatpush1.bf16.msra.mxu0 0
    %1235 = vmatprep.subr.bf16.mxu0 0
    %1236 = vmatpush1.bf16.msra.mxu0 0
    %1237 = vmatprep.subr.bf16.mxu0 0
    %1238 = vmatpush1.bf16.msra.mxu0 0
    %1239 = vmatprep.mubr.bf16.mxu0 0
    %1240 = vmatmul.mubr.bf16.gmra.mrb[0].mxu0 %v1165
    %v1241 = vpop.f32.mrb[0].mxu0
    %v1242 = vadd.f32 %v404, %v1241
    %v1243 = vpop.f32.mrb[0].mxu0
    %v1244 = vpop.f32.mrb[0].mxu0
    %v1245 = vpop.f32.mrb[0].mxu0
    %1246 = vdwg.mxu0
    %v1247 = vadd.f32 %v1162, %v1201
    %v1248 = vadd.f32 %v1163, %v1203
    %v1249 = vxor.u32 %v1247, 2147483648
    %v1250 = vmul.f32 %v1249, 1.442695
    %v1251 = vpow.pop %v1250
    %v1252 = vadd.f32 %v1251, 1.0
    %v1253 = vrcp.pop %v1252
    %v1254 = vmul.f32 1.0, %v1253
    %v1255 = vxor.u32 %v1248, 2147483648
    %v1256 = vmul.f32 %v1255, 1.442695
    %v1257 = vpow.pop %v1256
    %v1258 = vadd.f32 %v1257, 1.0
    %v1259 = vrcp.pop %v1258
    %v1260 = vmul.f32 1.0, %v1259
    %v1261 = vmul.f32 %v1254, %v1242
    %v1262 = vadd.f32 %v1164, %v1261
    %v1263 = vtanh.pop %v1262
    %v1264 = vsub.f32 %v1161, %v1263
    %v1265 = vmul.f32 %v1260, %v1264
    %v1266 = vadd.f32 %v1263, %v1265
    %v1267 = vld [vmem:[#allocation2 + $0xa8] sm:$0xff]
    %v1268 = vld [vmem:[#allocation2 + $0xb0] sm:$0xff]
    %v1269 = vld [vmem:[#allocation2 + $0xb8] sm:$0xff]
    %v1270 = vpack.c.bf16 %v1266, %v1266
    %1271 = vmatprep.subr.bf16.mxu0 %v489
    %1272 = vmatpush1.bf16.msra.mxu0 %v488
    %1273 = vmatprep.subr.bf16.mxu0 %v492
    %1274 = vmatpush1.bf16.msra.mxu0 %v491
    %1275 = vmatprep.subr.bf16.mxu0 %v495
    %1276 = vmatpush1.bf16.msra.mxu0 %v494
    %1277 = vmatprep.subr.bf16.mxu0 %v498
    %1278 = vmatpush1.bf16.msra.mxu0 %v497
    %1279 = vmatprep.subr.bf16.mxu0 %v501
    %1280 = vmatpush1.bf16.msra.mxu0 %v500
    %1281 = vmatprep.subr.bf16.mxu0 %v504
    %1282 = vmatpush1.bf16.msra.mxu0 %v503
    %1283 = vmatprep.subr.bf16.mxu0 %v507
    %1284 = vmatpush1.bf16.msra.mxu0 %v506
    %1285 = vmatprep.subr.bf16.mxu0 %v510
    %1286 = vmatpush1.bf16.msra.mxu0 %v509
    %1287 = vmatprep.subr.bf16.mxu0 0
    %1288 = vmatpush1.bf16.msra.mxu0 0
    %1289 = vmatprep.subr.bf16.mxu0 0
    %1290 = vmatpush1.bf16.msra.mxu0 0
    %1291 = vmatprep.subr.bf16.mxu0 0
    %1292 = vmatpush1.bf16.msra.mxu0 0
    %1293 = vmatprep.subr.bf16.mxu0 0
    %1294 = vmatpush1.bf16.msra.mxu0 0
    %1295 = vmatprep.subr.bf16.mxu0 0
    %1296 = vmatpush1.bf16.msra.mxu0 0
    %1297 = vmatprep.subr.bf16.mxu0 0
    %1298 = vmatpush1.bf16.msra.mxu0 0
    %1299 = vmatprep.subr.bf16.mxu0 0
    %1300 = vmatpush1.bf16.msra.mxu0 0
    %1301 = vmatprep.subr.bf16.mxu0 0
    %1302 = vmatpush1.bf16.msra.mxu0 0
    %1303 = vmatprep.mubr.bf16.mxu0 0
    %1304 = vmatmul.mubr.bf16.gmra.mrb[0].mxu0 %v1270
    %v1305 = vpop.f32.mrb[0].mxu0
    %v1306 = vadd.f32 %v396, %v1305
    %v1307 = vpop.f32.mrb[0].mxu0
    %v1308 = vadd.f32 %v400, %v1307
    %v1309 = vpop.f32.mrb[0].mxu0
    %v1310 = vpop.f32.mrb[0].mxu0
    %1311 = vdwg.mxu0
    %1312 = vmatprep.subr.bf16.mxu0 0
    %1313 = vmatpush1.bf16.msra.mxu0 %v490
    %1314 = vmatprep.subr.bf16.mxu0 0
    %1315 = vmatpush1.bf16.msra.mxu0 %v493
    %1316 = vmatprep.subr.bf16.mxu0 0
    %1317 = vmatpush1.bf16.msra.mxu0 %v496
    %1318 = vmatprep.subr.bf16.mxu0 0
    %1319 = vmatpush1.bf16.msra.mxu0 %v499
    %1320 = vmatprep.subr.bf16.mxu0 0
    %1321 = vmatpush1.bf16.msra.mxu0 %v502
    %1322 = vmatprep.subr.bf16.mxu0 0
    %1323 = vmatpush1.bf16.msra.mxu0 %v505
    %1324 = vmatprep.subr.bf16.mxu0 0
    %1325 = vmatpush1.bf16.msra.mxu0 %v508
    %1326 = vmatprep.subr.bf16.mxu0 0
    %1327 = vmatpush1.bf16.msra.mxu0 %v511
    %1328 = vmatprep.subr.bf16.mxu0 0
    %1329 = vmatpush1.bf16.msra.mxu0 0
    %1330 = vmatprep.subr.bf16.mxu0 0
    %1331 = vmatpush1.bf16.msra.mxu0 0
    %1332 = vmatprep.subr.bf16.mxu0 0
    %1333 = vmatpush1.bf16.msra.mxu0 0
    %1334 = vmatprep.subr.bf16.mxu0 0
    %1335 = vmatpush1.bf16.msra.mxu0 0
    %1336 = vmatprep.subr.bf16.mxu0 0
    %1337 = vmatpush1.bf16.msra.mxu0 0
    %1338 = vmatprep.subr.bf16.mxu0 0
    %1339 = vmatpush1.bf16.msra.mxu0 0
    %1340 = vmatprep.subr.bf16.mxu0 0
    %1341 = vmatpush1.bf16.msra.mxu0 0
    %1342 = vmatprep.subr.bf16.mxu0 0
    %1343 = vmatpush1.bf16.msra.mxu0 0
    %1344 = vmatprep.mubr.bf16.mxu0 0
    %1345 = vmatmul.mubr.bf16.gmra.mrb[0].mxu0 %v1270
    %v1346 = vpop.f32.mrb[0].mxu0
    %v1347 = vadd.f32 %v404, %v1346
    %v1348 = vpop.f32.mrb[0].mxu0
    %v1349 = vpop.f32.mrb[0].mxu0
    %v1350 = vpop.f32.mrb[0].mxu0
    %1351 = vdwg.mxu0
    %v1352 = vadd.f32 %v1267, %v1306
    %v1353 = vadd.f32 %v1268, %v1308
    %v1354 = vxor.u32 %v1352, 2147483648
    %v1355 = vmul.f32 %v1354, 1.442695
    %v1356 = vpow.pop %v1355
    %v1357 = vadd.f32 %v1356, 1.0
    %v1358 = vrcp.pop %v1357
    %v1359 = vmul.f32 1.0, %v1358
    %v1360 = vxor.u32 %v1353, 2147483648
    %v1361 = vmul.f32 %v1360, 1.442695
    %v1362 = vpow.pop %v1361
    %v1363 = vadd.f32 %v1362, 1.0
    %v1364 = vrcp.pop %v1363
    %v1365 = vmul.f32 1.0, %v1364
    %v1366 = vmul.f32 %v1359, %v1347
    %v1367 = vadd.f32 %v1269, %v1366
    %v1368 = vtanh.pop %v1367
    %v1369 = vsub.f32 %v1266, %v1368
    %v1370 = vmul.f32 %v1365, %v1369
    %v1371 = vadd.f32 %v1368, %v1370
    %v1372 = vld [vmem:[%s8] sm:$0x1]
    %v1373 = vadd.f32 %v1372, 1e-05
    %v1374 = vrsqrt.pop %v1373
    %v1375 = vld [vmem:[%s7] sm:$0x1]
    %v1377 = vlaneseq
    %v1378 = vshrl.u32 %v1377, 7
    %v1379 = vsub.s32 0, %v1378
    %v1380 = vrot.slane %v1375, %v1379
    %v1382 = vsub.f32 %v1371, %v1380
    %v1384 = vlaneseq
    %v1385 = vshrl.u32 %v1384, 7
    %v1386 = vsub.s32 0, %v1385
    %v1387 = vrot.slane %v1374, %v1386
    %v1389 = vmul.f32 %v1382, %v1387
    %v1390 = vld [vmem:[%s5] sm:$0x1]
    %v1392 = vlaneseq
    %v1393 = vshrl.u32 %v1392, 7
    %v1394 = vsub.s32 0, %v1393
    %v1395 = vrot.slane %v1390, %v1394
    %v1397 = vmul.f32 %v1389, %v1395
    %v1398 = vld [vmem:[%s6] sm:$0x1]
    %v1400 = vlaneseq
    %v1401 = vshrl.u32 %v1400, 7
    %v1402 = vsub.s32 0, %v1401
    %v1403 = vrot.slane %v1398, %v1402
    %v1405 = vadd.f32 %v1397, %v1403
    %v1406 = vld [vmem:[%s9] sm:$0xff]
    %v1407 = vld [vmem:[%s9 + $0x8] sm:$0xff]
    %v1408 = vld [vmem:[%s9 + $0x10] sm:$0xff]
    %v1409 = vld [vmem:[%s9 + $0x18] sm:$0xff]
    %v1410 = vld [vmem:[%s9 + $0x20] sm:$0xff]
    %v1411 = vld [vmem:[%s9 + $0x28] sm:$0xff]
    %v1412 = vld [vmem:[%s9 + $0x30] sm:$0xff]
    %v1413 = vld [vmem:[%s9 + $0x38] sm:$0xff]
    %v1414 = vld [vmem:[%s9 + $0x40] sm:$0xff]
    %v1415 = vld [vmem:[%s9 + $0x48] sm:$0xff]
    %v1416 = vld [vmem:[%s9 + $0x50] sm:$0xff]
    %v1417 = vld [vmem:[%s9 + $0x58] sm:$0xff]
    %v1418 = vld [vmem:[%s9 + $0x60] sm:$0xff]
    %v1419 = vld [vmem:[%s9 + $0x68] sm:$0xff]
    %v1420 = vld [vmem:[%s9 + $0x70] sm:$0xff]
    %v1421 = vld [vmem:[%s9 + $0x78] sm:$0xff]
    %v1422 = vld [vmem:[%s10] sm:$0x1]
    %v1424 = vlaneseq
    %v1425 = vshrl.u32 %v1424, 7
    %v1426 = vsub.s32 0, %v1425
    %v1427 = vrot.slane %v1422, %v1426
    %1429 = vmatprep.subr.mxu0 0.0
    %1430 = vmatpush1.msra.mxu0 %v1406
    %1431 = vmatprep.subr.mxu0 0.0
    %1432 = vmatpush1.msra.mxu0 %v1407
    %1433 = vmatprep.subr.mxu0 0.0
    %1434 = vmatpush1.msra.mxu0 %v1408
    %1435 = vmatprep.subr.mxu0 0.0
    %1436 = vmatpush1.msra.mxu0 %v1409
    %1437 = vmatprep.subr.mxu0 0.0
    %1438 = vmatpush1.msra.mxu0 %v1410
    %1439 = vmatprep.subr.mxu0 0.0
    %1440 = vmatpush1.msra.mxu0 %v1411
    %1441 = vmatprep.subr.mxu0 0.0
    %1442 = vmatpush1.msra.mxu0 %v1412
    %1443 = vmatprep.subr.mxu0 0.0
    %1444 = vmatpush1.msra.mxu0 %v1413
    %1445 = vmatprep.subr.mxu0 0.0
    %1446 = vmatpush1.msra.mxu0 %v1414
    %1447 = vmatprep.subr.mxu0 0.0
    %1448 = vmatpush1.msra.mxu0 %v1415
    %1449 = vmatprep.subr.mxu0 0.0
    %1450 = vmatpush1.msra.mxu0 %v1416
    %1451 = vmatprep.subr.mxu0 0.0
    %1452 = vmatpush1.msra.mxu0 %v1417
    %1453 = vmatprep.subr.mxu0 0.0
    %1454 = vmatpush1.msra.mxu0 %v1418
    %1455 = vmatprep.subr.mxu0 0.0
    %1456 = vmatpush1.msra.mxu0 %v1419
    %1457 = vmatprep.subr.mxu0 0.0
    %1458 = vmatpush1.msra.mxu0 %v1420
    %1459 = vmatprep.subr.mxu0 0.0
    %1460 = vmatpush1.msra.mxu0 %v1421
    %1461 = vmatprep.subr.mxu0 0.0
    %1462 = vmatpush1.msra.mxu0 0.0
    %1463 = vmatprep.subr.mxu0 0.0
    %1464 = vmatpush1.msra.mxu0 0.0
    %1465 = vmatprep.subr.mxu0 0.0
    %1466 = vmatpush1.msra.mxu0 0.0
    %1467 = vmatprep.subr.mxu0 0.0
    %1468 = vmatpush1.msra.mxu0 0.0
    %1469 = vmatprep.subr.mxu0 0.0
    %1470 = vmatpush1.msra.mxu0 0.0
    %1471 = vmatprep.subr.mxu0 0.0
    %1472 = vmatpush1.msra.mxu0 0.0
    %1473 = vmatprep.subr.mxu0 0.0
    %1474 = vmatpush1.msra.mxu0 0.0
    %1475 = vmatprep.subr.mxu0 0.0
    %1476 = vmatpush1.msra.mxu0 0.0
    %1477 = vmatprep.subr.mxu0 0.0
    %1478 = vmatpush1.msra.mxu0 0.0
    %1479 = vmatprep.subr.mxu0 0.0
    %1480 = vmatpush1.msra.mxu0 0.0
    %1481 = vmatprep.subr.mxu0 0.0
    %1482 = vmatpush1.msra.mxu0 0.0
    %1483 = vmatprep.subr.mxu0 0.0
    %1484 = vmatpush1.msra.mxu0 0.0
    %1485 = vmatprep.subr.mxu0 0.0
    %1486 = vmatpush1.msra.mxu0 0.0
    %1487 = vmatprep.subr.mxu0 0.0
    %1488 = vmatpush1.msra.mxu0 0.0
    %1489 = vmatprep.subr.mxu0 0.0
    %1490 = vmatpush1.msra.mxu0 0.0
    %1491 = vmatprep.subr.mxu0 0.0
    %1492 = vmatpush1.msra.mxu0 0.0
    %1493 = vmatprep.mubr.f32.mxu0 0.0
    %1494 = vmatmul.mubr.f32.gmra.mrb[0].mxu0 %v1405
    %v1495 = vpop.f32.mrb[0].mxu0
    %v1496 = vadd.f32 %v1427, %v1495
    %v1497 = vpop.f32.mrb[0].mxu0
    %1498 = vdwg.mxu0
    %v1499 = vmax.f32 %v1496, 0.0
    %v1500 = vld [vmem:[%s11] sm:$0xff]
    %v1501 = vld [vmem:[%s11 + $0x8] sm:$0xff]
    %v1502 = vld [vmem:[%s11 + $0x10] sm:$0xff]
    %v1503 = vld [vmem:[%s11 + $0x18] sm:$0xff]
    %v1504 = vld [vmem:[%s11 + $0x20] sm:$0xff]
    %v1505 = vld [vmem:[%s11 + $0x28] sm:$0xff]
    %v1506 = vld [vmem:[%s11 + $0x30] sm:$0xff]
    %v1507 = vld [vmem:[%s11 + $0x38] sm:$0xff]
    %v1508 = vld [vmem:[%s11 + $0x40] sm:$0xff]
    %v1509 = vld [vmem:[%s11 + $0x48] sm:$0xff]
    %v1510 = vld [vmem:[%s11 + $0x50] sm:$0xff]
    %v1511 = vld [vmem:[%s11 + $0x58] sm:$0xff]
    %v1512 = vld [vmem:[%s11 + $0x60] sm:$0xff]
    %v1513 = vld [vmem:[%s11 + $0x68] sm:$0xff]
    %v1514 = vld [vmem:[%s11 + $0x70] sm:$0xff]
    %v1515 = vld [vmem:[%s11 + $0x78] sm:$0xff]
    %v1516 = vld [vmem:[%s12] sm:$0x1]
    %v1518 = vlaneseq
    %v1519 = vshrl.u32 %v1518, 7
    %v1520 = vsub.s32 0, %v1519
    %v1521 = vrot.slane %v1516, %v1520
    %1523 = vmatprep.subr.mxu0 0.0
    %1524 = vmatpush1.msra.mxu0 %v1500
    %1525 = vmatprep.subr.mxu0 0.0
    %1526 = vmatpush1.msra.mxu0 %v1501
    %1527 = vmatprep.subr.mxu0 0.0
    %1528 = vmatpush1.msra.mxu0 %v1502
    %1529 = vmatprep.subr.mxu0 0.0
    %1530 = vmatpush1.msra.mxu0 %v1503
    %1531 = vmatprep.subr.mxu0 0.0
    %1532 = vmatpush1.msra.mxu0 %v1504
    %1533 = vmatprep.subr.mxu0 0.0
    %1534 = vmatpush1.msra.mxu0 %v1505
    %1535 = vmatprep.subr.mxu0 0.0
    %1536 = vmatpush1.msra.mxu0 %v1506
    %1537 = vmatprep.subr.mxu0 0.0
    %1538 = vmatpush1.msra.mxu0 %v1507
    %1539 = vmatprep.subr.mxu0 0.0
    %1540 = vmatpush1.msra.mxu0 %v1508
    %1541 = vmatprep.subr.mxu0 0.0
    %1542 = vmatpush1.msra.mxu0 %v1509
    %1543 = vmatprep.subr.mxu0 0.0
    %1544 = vmatpush1.msra.mxu0 %v1510
    %1545 = vmatprep.subr.mxu0 0.0
    %1546 = vmatpush1.msra.mxu0 %v1511
    %1547 = vmatprep.subr.mxu0 0.0
    %1548 = vmatpush1.msra.mxu0 %v1512
    %1549 = vmatprep.subr.mxu0 0.0
    %1550 = vmatpush1.msra.mxu0 %v1513
    %1551 = vmatprep.subr.mxu0 0.0
    %1552 = vmatpush1.msra.mxu0 %v1514
    %1553 = vmatprep.subr.mxu0 0.0
    %1554 = vmatpush1.msra.mxu0 %v1515
    %1555 = vmatprep.subr.mxu0 0.0
    %1556 = vmatpush1.msra.mxu0 0.0
    %1557 = vmatprep.subr.mxu0 0.0
    %1558 = vmatpush1.msra.mxu0 0.0
    %1559 = vmatprep.subr.mxu0 0.0
    %1560 = vmatpush1.msra.mxu0 0.0
    %1561 = vmatprep.subr.mxu0 0.0
    %1562 = vmatpush1.msra.mxu0 0.0
    %1563 = vmatprep.subr.mxu0 0.0
    %1564 = vmatpush1.msra.mxu0 0.0
    %1565 = vmatprep.subr.mxu0 0.0
    %1566 = vmatpush1.msra.mxu0 0.0
    %1567 = vmatprep.subr.mxu0 0.0
    %1568 = vmatpush1.msra.mxu0 0.0
    %1569 = vmatprep.subr.mxu0 0.0
    %1570 = vmatpush1.msra.mxu0 0.0
    %1571 = vmatprep.subr.mxu0 0.0
    %1572 = vmatpush1.msra.mxu0 0.0
    %1573 = vmatprep.subr.mxu0 0.0
    %1574 = vmatpush1.msra.mxu0 0.0
    %1575 = vmatprep.subr.mxu0 0.0
    %1576 = vmatpush1.msra.mxu0 0.0
    %1577 = vmatprep.subr.mxu0 0.0
    %1578 = vmatpush1.msra.mxu0 0.0
    %1579 = vmatprep.subr.mxu0 0.0
    %1580 = vmatpush1.msra.mxu0 0.0
    %1581 = vmatprep.subr.mxu0 0.0
    %1582 = vmatpush1.msra.mxu0 0.0
    %1583 = vmatprep.subr.mxu0 0.0
    %1584 = vmatpush1.msra.mxu0 0.0
    %1585 = vmatprep.subr.mxu0 0.0
    %1586 = vmatpush1.msra.mxu0 0.0
    %1587 = vmatprep.mubr.f32.mxu0 0.0
    %1588 = vmatmul.mubr.f32.gmra.mrb[0].mxu0 %v1499
    %v1589 = vpop.f32.mrb[0].mxu0
    %v1590 = vadd.f32 %v1521, %v1589
    %v1591 = vpop.f32.mrb[0].mxu0
    %1592 = vdwg.mxu0
    %v1593 = vmax.f32 %v1590, 0.0
    %v1594 = vld [vmem:[%s13] sm:$0xff]
    %v1595 = vld [vmem:[%s13 + $0x8] sm:$0xff]
    %v1596 = vld [vmem:[%s13 + $0x10] sm:$0xff]
    %v1597 = vld [vmem:[%s13 + $0x18] sm:$0xff]
    %v1598 = vld [vmem:[%s13 + $0x20] sm:$0xff]
    %v1599 = vld [vmem:[%s13 + $0x28] sm:$0xff]
    %v1600 = vld [vmem:[%s13 + $0x30] sm:$0xff]
    %v1601 = vld [vmem:[%s13 + $0x38] sm:$0xff]
    %v1602 = vld [vmem:[%s13 + $0x40] sm:$0xff]
    %v1603 = vld [vmem:[%s13 + $0x48] sm:$0xff]
    %v1604 = vld [vmem:[%s13 + $0x50] sm:$0xff]
    %v1605 = vld [vmem:[%s13 + $0x58] sm:$0xff]
    %v1606 = vld [vmem:[%s13 + $0x60] sm:$0xff]
    %v1607 = vld [vmem:[%s13 + $0x68] sm:$0xff]
    %v1608 = vld [vmem:[%s13 + $0x70] sm:$0xff]
    %v1609 = vld [vmem:[%s13 + $0x78] sm:$0xff]
    %v1610 = vld [vmem:[%s14] sm:$0x1]
    %v1612 = vlaneseq
    %v1613 = vshrl.u32 %v1612, 7
    %v1614 = vsub.s32 0, %v1613
    %v1615 = vrot.slane %v1610, %v1614
    %1617 = vmatprep.subr.mxu0 0.0
    %1618 = vmatpush1.msra.mxu0 %v1594
    %1619 = vmatprep.subr.mxu0 0.0
    %1620 = vmatpush1.msra.mxu0 %v1595
    %1621 = vmatprep.subr.mxu0 0.0
    %1622 = vmatpush1.msra.mxu0 %v1596
    %1623 = vmatprep.subr.mxu0 0.0
    %1624 = vmatpush1.msra.mxu0 %v1597
    %1625 = vmatprep.subr.mxu0 0.0
    %1626 = vmatpush1.msra.mxu0 %v1598
    %1627 = vmatprep.subr.mxu0 0.0
    %1628 = vmatpush1.msra.mxu0 %v1599
    %1629 = vmatprep.subr.mxu0 0.0
    %1630 = vmatpush1.msra.mxu0 %v1600
    %1631 = vmatprep.subr.mxu0 0.0
    %1632 = vmatpush1.msra.mxu0 %v1601
    %1633 = vmatprep.subr.mxu0 0.0
    %1634 = vmatpush1.msra.mxu0 %v1602
    %1635 = vmatprep.subr.mxu0 0.0
    %1636 = vmatpush1.msra.mxu0 %v1603
    %1637 = vmatprep.subr.mxu0 0.0
    %1638 = vmatpush1.msra.mxu0 %v1604
    %1639 = vmatprep.subr.mxu0 0.0
    %1640 = vmatpush1.msra.mxu0 %v1605
    %1641 = vmatprep.subr.mxu0 0.0
    %1642 = vmatpush1.msra.mxu0 %v1606
    %1643 = vmatprep.subr.mxu0 0.0
    %1644 = vmatpush1.msra.mxu0 %v1607
    %1645 = vmatprep.subr.mxu0 0.0
    %1646 = vmatpush1.msra.mxu0 %v1608
    %1647 = vmatprep.subr.mxu0 0.0
    %1648 = vmatpush1.msra.mxu0 %v1609
    %1649 = vmatprep.subr.mxu0 0.0
    %1650 = vmatpush1.msra.mxu0 0.0
    %1651 = vmatprep.subr.mxu0 0.0
    %1652 = vmatpush1.msra.mxu0 0.0
    %1653 = vmatprep.subr.mxu0 0.0
    %1654 = vmatpush1.msra.mxu0 0.0
    %1655 = vmatprep.subr.mxu0 0.0
    %1656 = vmatpush1.msra.mxu0 0.0
    %1657 = vmatprep.subr.mxu0 0.0
    %1658 = vmatpush1.msra.mxu0 0.0
    %1659 = vmatprep.subr.mxu0 0.0
    %1660 = vmatpush1.msra.mxu0 0.0
    %1661 = vmatprep.subr.mxu0 0.0
    %1662 = vmatpush1.msra.mxu0 0.0
    %1663 = vmatprep.subr.mxu0 0.0
    %1664 = vmatpush1.msra.mxu0 0.0
    %1665 = vmatprep.subr.mxu0 0.0
    %1666 = vmatpush1.msra.mxu0 0.0
    %1667 = vmatprep.subr.mxu0 0.0
    %1668 = vmatpush1.msra.mxu0 0.0
    %1669 = vmatprep.subr.mxu0 0.0
    %1670 = vmatpush1.msra.mxu0 0.0
    %1671 = vmatprep.subr.mxu0 0.0
    %1672 = vmatpush1.msra.mxu0 0.0
    %1673 = vmatprep.subr.mxu0 0.0
    %1674 = vmatpush1.msra.mxu0 0.0
    %1675 = vmatprep.subr.mxu0 0.0
    %1676 = vmatpush1.msra.mxu0 0.0
    %1677 = vmatprep.subr.mxu0 0.0
    %1678 = vmatpush1.msra.mxu0 0.0
    %1679 = vmatprep.subr.mxu0 0.0
    %1680 = vmatpush1.msra.mxu0 0.0
    %1681 = vmatprep.mubr.f32.mxu0 0.0
    %1682 = vmatmul.mubr.f32.gmra.mrb[0].mxu0 %v1593
    %v1683 = vpop.f32.mrb[0].mxu0
    %v1684 = vadd.f32 %v1615, %v1683
    %v1685 = vpop.f32.mrb[0].mxu0
    %1686 = vdwg.mxu0
    %vm1687 = vcmask 64512
    %1688 = vst.msk [vmem:[#allocation3] sm:$0xff] %vm1687, %v1684
    // Predicated region
    $region62: #{gru_forward.1} parent=1 // pred_check
      _
    $region63: #{gru_forward.1} parent=1 // pred_check_branch
      %1690 = sbr.rel (0) target = $region65
    $region64: #{gru_forward.1} parent=1 // pred_region
      %s1692 = ssub.s32 128, 128
      %1693 = vsyncadd [#allocation4], %s1692
      %s1695 = sshll.u32 [#allocation3], 4
      %s1696 = int_to_ptr.vmem [resolvable:$true] %s1695
      %1698 = dma.vmem_to_hbm [thread:$0]  %s1696, 128, %s15, [#allocation4]
    $region65: #{gru_forward.1} parent=1 // pred_fallthru
      _
    // Predicated region
    $region66: #{gru_forward.1} parent=1 // pred_check
      _
    $region67: #{gru_forward.1} parent=1 // pred_check_branch
      %1700 = sbr.rel (0) target = $region69
    $region68: #{gru_forward.1} parent=1 // pred_region
      %1701 = dma.done [#allocation4], 128
    $region69: #{gru_forward.1} parent=1 // pred_fallthru
      _
    %1702 = vsyncpa [#allocation4], 1

</llo_original>
